<compile_context>
chip_gen: v7x
topology: tpu7x:2x2x1
jax: 0.10.0
libtpu: 0.0.40
codegen_flags: <defaults>
</compile_context>

<pallas_src>
import numpy as np
import jax
import jax.numpy as jnp
from jax import lax
from jax.experimental import pallas as pl
from jax.experimental.pallas import tpu as pltpu

LN_EPS = 1e-5
_TAPS = tuple((dy, dx) for dy in range(3) for dx in range(3))


def _tap_masks(H, W):
    """(9, 1, H*W) f32 masks: 1 where tap (dy,dx) reads a real (non-pad) pixel."""
    hh, ww = np.meshgrid(np.arange(H), np.arange(W), indexing="ij")
    hh = hh.reshape(-1)
    ww = ww.reshape(-1)
    m = np.zeros((9, 1, H * W), np.float32)
    for t, (dy, dx) in enumerate(_TAPS):
        valid = ((hh + dy - 1 >= 0) & (hh + dy - 1 < H) &
                 (ww + dx - 1 >= 0) & (ww + dx - 1 < W))
        m[t, 0, :] = valid.astype(np.float32)
    return jnp.asarray(m)


def block_forward(x_nchw, ln_w, ln_b, w1, b1, w2, b2):
    """NCHW in / NCHW out, matching the PyTorch module."""
    N, Cin, H, W = x_nchw.shape
    Cout = w1.shape[0]
    S = H * W
    Cmax = max(Cin, Cout)

    # Free reshapes only (no activation transposes).
    x = x_nchw.reshape(N, Cin, S)
    g = ln_w.reshape(Cin, S).astype(jnp.float32)
    be = ln_b.reshape(Cin, S).astype(jnp.float32)
    # OIHW -> (O, ky, kx, I) -> (O, 9*I): column = (ky*3 + kx)*I + i, matching
    # the row order of the im2col patch matrix built inside the kernel.
    w1m = jnp.transpose(w1, (0, 2, 3, 1)).reshape(Cout, 9 * Cin).astype(jnp.float32)
    w2m = jnp.transpose(w2, (0, 2, 3, 1)).reshape(Cout, 9 * Cout).astype(jnp.float32)
    b1c = b1.reshape(Cout, 1).astype(jnp.float32)
    b2c = b2.reshape(Cout, 1).astype(jnp.float32)
    masks = _tap_masks(H, W)

    def kernel(x_ref, g_ref, be_ref, m_ref, w1_ref, b1_ref, w2_ref, b2_ref,
               o_ref, patch_ref):
        xs = x_ref[0].astype(jnp.float32)                    # (Cin, S)

        # ---- LayerNorm over the whole (C, H, W) of this sample, elementwise affine
        mean = jnp.mean(xs)
        var = jnp.mean(jnp.square(xs - mean))
        xn = (xs - mean) * lax.rsqrt(var + LN_EPS)
        xn = xn * g_ref[...] + be_ref[...]

        def im2col(src, C):
            # Build the (9*C, S) patch matrix. Row block t holds tap
            # (dy, dx) = _TAPS[t]: src shifted by (dy-1)*W + (dx-1) along the
            # flattened spatial axis, with out-of-image pixels zeroed by the
            # precomputed mask (the circular wrap from roll lands only on
            # masked positions, so it never leaks).
            for t, (dy, dx) in enumerate(_TAPS):
                off = (dy - 1) * W + (dx - 1)
                shift = (-off) % S
                tap = src if shift == 0 else pltpu.roll(src, shift=shift, axis=1)
                patch_ref[t * C:(t + 1) * C, :] = tap * m_ref[t]
            return patch_ref[0:9 * C, :]

        # ---- conv1 (3x3, stride 1, pad 1): single MXU matmul + bias + SiLU
        p1 = im2col(xn, Cin)                                 # (9*Cin, S)
        h = jnp.dot(w1_ref[...], p1,
                    preferred_element_type=jnp.float32) + b1_ref[...]
        h = h * jax.nn.sigmoid(h)                            # SiLU, (Cout, S)

        # ---- conv2: single MXU matmul + bias + SiLU
        p2 = im2col(h, Cout)                                 # (9*Cout, S)
        h2 = jnp.dot(w2_ref[...], p2,
                     preferred_element_type=jnp.float32) + b2_ref[...]
        h2 = h2 * jax.nn.sigmoid(h2)

        o_ref[0] = h2.astype(o_ref.dtype)                    # lane-dense store

    # For large N, several samples can be folded into one grid step (block
    # (B, Cin, S) + batched dot) to amortize the ~0.35us/step overhead; kept
    # at 1 sample/step here so the grid retains >= 2 parallel steps for the
    # two TensorCores on v7x even at small N. All buffers are tiny (<<1 MiB),
    # well under the v7x 64 MiB VMEM budget.
    out_flat = pl.pallas_call(
        kernel,
        out_shape=jax.ShapeDtypeStruct((N, Cout, S), x_nchw.dtype),
        grid_spec=pltpu.PrefetchScalarGridSpec(
            num_scalar_prefetch=0,
            grid=(N,),
            in_specs=[
                pl.BlockSpec((1, Cin, S), lambda n: (n, 0, 0)),       # x
                pl.BlockSpec((Cin, S), lambda n: (0, 0)),             # LN gamma
                pl.BlockSpec((Cin, S), lambda n: (0, 0)),             # LN beta
                pl.BlockSpec((9, 1, S), lambda n: (0, 0, 0)),         # tap masks
                pl.BlockSpec((Cout, 9 * Cin), lambda n: (0, 0)),      # w1 (im2col)
                pl.BlockSpec((Cout, 1), lambda n: (0, 0)),            # b1
                pl.BlockSpec((Cout, 9 * Cout), lambda n: (0, 0)),     # w2 (im2col)
                pl.BlockSpec((Cout, 1), lambda n: (0, 0)),            # b2
            ],
            out_specs=pl.BlockSpec((1, Cout, S), lambda n: (n, 0, 0)),
            scratch_shapes=[
                pltpu.VMEM((9 * Cmax, S), jnp.float32),   # shared im2col patch buffer
            ],
        ),
        compiler_params=pltpu.CompilerParams(
            dimension_semantics=("parallel",)),
    )(x, g, be, masks, w1m, b1c, w2m, b2c)

    return out_flat.reshape(N, Cout, H, W)


def reference(x, ln_w, ln_b, w1, b1, w2, b2):
    """Pure-JAX reference of the PyTorch module (NCHW)."""
    mean = jnp.mean(x, axis=(1, 2, 3), keepdims=True)
    var = jnp.mean(jnp.square(x - mean), axis=(1, 2, 3), keepdims=True)
    xn = (x - mean) / jnp.sqrt(var + LN_EPS) * ln_w[None] + ln_b[None]
    dn = ('NCHW', 'OIHW', 'NCHW')
    h = lax.conv_general_dilated(xn, w1, (1, 1), ((1, 1), (1, 1)),
                                 dimension_numbers=dn) + b1[None, :, None, None]
    h = h * jax.nn.sigmoid(h)
    h2 = lax.conv_general_dilated(h, w2, (1, 1), ((1, 1), (1, 1)),
                                  dimension_numbers=dn) + b2[None, :, None, None]
    return h2 * jax.nn.sigmoid(h2)


if __name__ == "__main__":
    # Block(shape=(Cin, H, W), in_c=Cin, out_c=Cout)
    N, Cin, Cout, H, W = 2, 4, 8, 16, 16

    key = jax.random.PRNGKey(0)
    kx, kg, kb, kw1, kb1, kw2, kb2 = jax.random.split(key, 7)

    x = jax.random.normal(kx, (N, Cin, H, W), jnp.float32)
    ln_w = 1.0 + 0.1 * jax.random.normal(kg, (Cin, H, W), jnp.float32)
    ln_b = 0.1 * jax.random.normal(kb, (Cin, H, W), jnp.float32)
    w1 = 0.2 * jax.random.normal(kw1, (Cout, Cin, 3, 3), jnp.float32)
    b1 = 0.1 * jax.random.normal(kb1, (Cout,), jnp.float32)
    w2 = 0.2 * jax.random.normal(kw2, (Cout, Cout, 3, 3), jnp.float32)
    b2 = 0.1 * jax.random.normal(kb2, (Cout,), jnp.float32)

    out = jax.block_until_ready(block_forward(x, ln_w, ln_b, w1, b1, w2, b2))
    ref = jax.block_until_ready(reference(x, ln_w, ln_b, w1, b1, w2, b2))

    np.testing.assert_allclose(np.asarray(out), np.asarray(ref),
                               rtol=2e-3, atol=2e-3)
    print("KERNEL_OK")
</pallas_src>

<mosaic_0001>
module attributes {stable_mosaic.version = 11 : i64} {
  func.func @kernel(%arg0: i32, %arg1: memref<1x4x256xf32, #tpu.memory_space<vmem>>, %arg2: memref<4x256xf32, #tpu.memory_space<vmem>>, %arg3: memref<4x256xf32, #tpu.memory_space<vmem>>, %arg4: memref<9x1x256xf32, #tpu.memory_space<vmem>>, %arg5: memref<8x36xf32, #tpu.memory_space<vmem>>, %arg6: memref<8x1xf32, #tpu.memory_space<vmem>>, %arg7: memref<8x72xf32, #tpu.memory_space<vmem>>, %arg8: memref<8x1xf32, #tpu.memory_space<vmem>>, %arg9: memref<1x8x256xf32, #tpu.memory_space<vmem>>, %arg10: memref<72x256xf32, #tpu.memory_space<vmem>>) attributes {dimension_semantics = [#tpu.dimension_semantics<parallel>], iteration_bounds = array<i64: 2>, scalar_prefetch = 0 : i64, scratch_operands = 1 : i64, tpu.core_type = #tpu.core_type<tc>, window_params = [{transform_indices = @transform_0, window_bounds = array<i64: 1, 4, 256>}, {pipeline_mode = #tpu.pipeline_mode<synchronous>, transform_indices = @transform_1, window_bounds = array<i64: 4, 256>}, {pipeline_mode = #tpu.pipeline_mode<synchronous>, transform_indices = @transform_2, window_bounds = array<i64: 4, 256>}, {pipeline_mode = #tpu.pipeline_mode<synchronous>, transform_indices = @transform_3, window_bounds = array<i64: 9, 1, 256>}, {pipeline_mode = #tpu.pipeline_mode<synchronous>, transform_indices = @transform_4, window_bounds = array<i64: 8, 36>}, {pipeline_mode = #tpu.pipeline_mode<synchronous>, transform_indices = @transform_5, window_bounds = array<i64: 8, 1>}, {pipeline_mode = #tpu.pipeline_mode<synchronous>, transform_indices = @transform_6, window_bounds = array<i64: 8, 72>}, {pipeline_mode = #tpu.pipeline_mode<synchronous>, transform_indices = @transform_7, window_bounds = array<i64: 8, 1>}, {transform_indices = @transform_8, window_bounds = array<i64: 1, 8, 256>}]} {
    %c0 = arith.constant 0 : index
    %c0_0 = arith.constant 0 : index
    %c0_1 = arith.constant 0 : index
    %0 = vector.load %arg1[%c0, %c0_0, %c0_1] : memref<1x4x256xf32, #tpu.memory_space<vmem>>, vector<1x4x256xf32>
    %1 = vector.shape_cast %0 : vector<1x4x256xf32> to vector<4x256xf32>
    %2 = vector.shape_cast %1 : vector<4x256xf32> to vector<1x4x256xf32>
    %cst = arith.constant dense<0.000000e+00> : vector<1xf32>
    %3 = vector.multi_reduction <add>, %2, %cst [1, 2] : vector<1x4x256xf32> to vector<1xf32>
    %4 = vector.shape_cast %3 : vector<1xf32> to vector<1x1x1xf32>
    %5 = vector.extract %4[0, 0, 0] : f32 from vector<1x1x1xf32>
    %cst_2 = arith.constant 1.024000e+03 : f32
    %6 = arith.divf %5, %cst_2 : f32
    %7 = vector.broadcast %6 : f32 to vector<4x256xf32>
    %8 = arith.subf %1, %7 : vector<4x256xf32>
    %9 = arith.mulf %8, %8 : vector<4x256xf32>
    %10 = vector.shape_cast %9 : vector<4x256xf32> to vector<1x4x256xf32>
    %cst_3 = arith.constant dense<0.000000e+00> : vector<1xf32>
    %11 = vector.multi_reduction <add>, %10, %cst_3 [1, 2] : vector<1x4x256xf32> to vector<1xf32>
    %12 = vector.shape_cast %11 : vector<1xf32> to vector<1x1x1xf32>
    %13 = vector.extract %12[0, 0, 0] : f32 from vector<1x1x1xf32>
    %cst_4 = arith.constant 1.024000e+03 : f32
    %14 = arith.divf %13, %cst_4 : f32
    %15 = vector.broadcast %6 : f32 to vector<4x256xf32>
    %16 = arith.subf %1, %15 : vector<4x256xf32>
    %cst_5 = arith.constant 9.99999974E-6 : f32
    %17 = arith.addf %14, %cst_5 : f32
    %18 = math.rsqrt %17 : f32
    %19 = vector.broadcast %18 : f32 to vector<4x256xf32>
    %20 = arith.mulf %16, %19 : vector<4x256xf32>
    %c0_6 = arith.constant 0 : index
    %c0_7 = arith.constant 0 : index
    %21 = vector.load %arg2[%c0_6, %c0_7] : memref<4x256xf32, #tpu.memory_space<vmem>>, vector<4x256xf32>
    %22 = arith.mulf %20, %21 : vector<4x256xf32>
    %c0_8 = arith.constant 0 : index
    %c0_9 = arith.constant 0 : index
    %23 = vector.load %arg3[%c0_8, %c0_9] : memref<4x256xf32, #tpu.memory_space<vmem>>, vector<4x256xf32>
    %24 = arith.addf %22, %23 : vector<4x256xf32>
    %c17_i32 = arith.constant 17 : i32
    %25 = tpu.dynamic_rotate %24 by %c17_i32 dim 1 : vector<4x256xf32>, i32 -> vector<4x256xf32>
    %c0_10 = arith.constant 0 : index
    %c0_11 = arith.constant 0 : index
    %c0_12 = arith.constant 0 : index
    %26 = vector.load %arg4[%c0_10, %c0_11, %c0_12] : memref<9x1x256xf32, #tpu.memory_space<vmem>>, vector<1x1x256xf32>
    %27 = vector.shape_cast %26 : vector<1x1x256xf32> to vector<1x256xf32>
    %28 = vector.broadcast %27 : vector<1x256xf32> to vector<4x256xf32>
    %29 = arith.mulf %25, %28 : vector<4x256xf32>
    %c0_13 = arith.constant 0 : index
    %c0_14 = arith.constant 0 : index
    %30 = vector.load %arg10[%c0_13, %c0_14] : memref<72x256xf32, #tpu.memory_space<vmem>>, vector<4x256xf32>
    tpu.vector_store %arg10[%c0_13, %c0_14], %29 {strides = array<i32>} : memref<72x256xf32, #tpu.memory_space<vmem>>, vector<4x256xf32>,
    %c16_i32 = arith.constant 16 : i32
    %31 = tpu.dynamic_rotate %24 by %c16_i32 dim 1 : vector<4x256xf32>, i32 -> vector<4x256xf32>
    %c1 = arith.constant 1 : index
    %c0_15 = arith.constant 0 : index
    %c0_16 = arith.constant 0 : index
    %32 = vector.load %arg4[%c1, %c0_15, %c0_16] : memref<9x1x256xf32, #tpu.memory_space<vmem>>, vector<1x1x256xf32>
    %33 = vector.shape_cast %32 : vector<1x1x256xf32> to vector<1x256xf32>
    %34 = vector.broadcast %33 : vector<1x256xf32> to vector<4x256xf32>
    %35 = arith.mulf %31, %34 : vector<4x256xf32>
    %c4 = arith.constant 4 : index
    %c0_17 = arith.constant 0 : index
    %36 = vector.load %arg10[%c4, %c0_17] : memref<72x256xf32, #tpu.memory_space<vmem>>, vector<4x256xf32>
    tpu.vector_store %arg10[%c4, %c0_17], %35 {strides = array<i32>} : memref<72x256xf32, #tpu.memory_space<vmem>>, vector<4x256xf32>,
    %c15_i32 = arith.constant 15 : i32
    %37 = tpu.dynamic_rotate %24 by %c15_i32 dim 1 : vector<4x256xf32>, i32 -> vector<4x256xf32>
    %c2 = arith.constant 2 : index
    %c0_18 = arith.constant 0 : index
    %c0_19 = arith.constant 0 : index
    %38 = vector.load %arg4[%c2, %c0_18, %c0_19] : memref<9x1x256xf32, #tpu.memory_space<vmem>>, vector<1x1x256xf32>
    %39 = vector.shape_cast %38 : vector<1x1x256xf32> to vector<1x256xf32>
    %40 = vector.broadcast %39 : vector<1x256xf32> to vector<4x256xf32>
    %41 = arith.mulf %37, %40 : vector<4x256xf32>
    %c8 = arith.constant 8 : index
    %c0_20 = arith.constant 0 : index
    %42 = vector.load %arg10[%c8, %c0_20] : memref<72x256xf32, #tpu.memory_space<vmem>>, vector<4x256xf32>
    tpu.vector_store %arg10[%c8, %c0_20], %41 {strides = array<i32>} : memref<72x256xf32, #tpu.memory_space<vmem>>, vector<4x256xf32>,
    %c1_i32 = arith.constant 1 : i32
    %43 = tpu.dynamic_rotate %24 by %c1_i32 dim 1 : vector<4x256xf32>, i32 -> vector<4x256xf32>
    %c3 = arith.constant 3 : index
    %c0_21 = arith.constant 0 : index
    %c0_22 = arith.constant 0 : index
    %44 = vector.load %arg4[%c3, %c0_21, %c0_22] : memref<9x1x256xf32, #tpu.memory_space<vmem>>, vector<1x1x256xf32>
    %45 = vector.shape_cast %44 : vector<1x1x256xf32> to vector<1x256xf32>
    %46 = vector.broadcast %45 : vector<1x256xf32> to vector<4x256xf32>
    %47 = arith.mulf %43, %46 : vector<4x256xf32>
    %c12 = arith.constant 12 : index
    %c0_23 = arith.constant 0 : index
    %48 = vector.load %arg10[%c12, %c0_23] : memref<72x256xf32, #tpu.memory_space<vmem>>, vector<4x256xf32>
    tpu.vector_store %arg10[%c12, %c0_23], %47 {strides = array<i32>} : memref<72x256xf32, #tpu.memory_space<vmem>>, vector<4x256xf32>,
    %c4_24 = arith.constant 4 : index
    %c0_25 = arith.constant 0 : index
    %c0_26 = arith.constant 0 : index
    %49 = vector.load %arg4[%c4_24, %c0_25, %c0_26] : memref<9x1x256xf32, #tpu.memory_space<vmem>>, vector<1x1x256xf32>
    %50 = vector.shape_cast %49 : vector<1x1x256xf32> to vector<1x256xf32>
    %51 = vector.broadcast %50 : vector<1x256xf32> to vector<4x256xf32>
    %52 = arith.mulf %24, %51 : vector<4x256xf32>
    %c16 = arith.constant 16 : index
    %c0_27 = arith.constant 0 : index
    %53 = vector.load %arg10[%c16, %c0_27] : memref<72x256xf32, #tpu.memory_space<vmem>>, vector<4x256xf32>
    tpu.vector_store %arg10[%c16, %c0_27], %52 {strides = array<i32>} : memref<72x256xf32, #tpu.memory_space<vmem>>, vector<4x256xf32>,
    %c255_i32 = arith.constant 255 : i32
    %54 = tpu.dynamic_rotate %24 by %c255_i32 dim 1 : vector<4x256xf32>, i32 -> vector<4x256xf32>
    %c5 = arith.constant 5 : index
    %c0_28 = arith.constant 0 : index
    %c0_29 = arith.constant 0 : index
    %55 = vector.load %arg4[%c5, %c0_28, %c0_29] : memref<9x1x256xf32, #tpu.memory_space<vmem>>, vector<1x1x256xf32>
    %56 = vector.shape_cast %55 : vector<1x1x256xf32> to vector<1x256xf32>
    %57 = vector.broadcast %56 : vector<1x256xf32> to vector<4x256xf32>
    %58 = arith.mulf %54, %57 : vector<4x256xf32>
    %c20 = arith.constant 20 : index
    %c0_30 = arith.constant 0 : index
    %59 = vector.load %arg10[%c20, %c0_30] : memref<72x256xf32, #tpu.memory_space<vmem>>, vector<4x256xf32>
    tpu.vector_store %arg10[%c20, %c0_30], %58 {strides = array<i32>} : memref<72x256xf32, #tpu.memory_space<vmem>>, vector<4x256xf32>,
    %c241_i32 = arith.constant 241 : i32
    %60 = tpu.dynamic_rotate %24 by %c241_i32 dim 1 : vector<4x256xf32>, i32 -> vector<4x256xf32>
    %c6 = arith.constant 6 : index
    %c0_31 = arith.constant 0 : index
    %c0_32 = arith.constant 0 : index
    %61 = vector.load %arg4[%c6, %c0_31, %c0_32] : memref<9x1x256xf32, #tpu.memory_space<vmem>>, vector<1x1x256xf32>
    %62 = vector.shape_cast %61 : vector<1x1x256xf32> to vector<1x256xf32>
    %63 = vector.broadcast %62 : vector<1x256xf32> to vector<4x256xf32>
    %64 = arith.mulf %60, %63 : vector<4x256xf32>
    %c24 = arith.constant 24 : index
    %c0_33 = arith.constant 0 : index
    %65 = vector.load %arg10[%c24, %c0_33] : memref<72x256xf32, #tpu.memory_space<vmem>>, vector<4x256xf32>
    tpu.vector_store %arg10[%c24, %c0_33], %64 {strides = array<i32>} : memref<72x256xf32, #tpu.memory_space<vmem>>, vector<4x256xf32>,
    %c240_i32 = arith.constant 240 : i32
    %66 = tpu.dynamic_rotate %24 by %c240_i32 dim 1 : vector<4x256xf32>, i32 -> vector<4x256xf32>
    %c7 = arith.constant 7 : index
    %c0_34 = arith.constant 0 : index
    %c0_35 = arith.constant 0 : index
    %67 = vector.load %arg4[%c7, %c0_34, %c0_35] : memref<9x1x256xf32, #tpu.memory_space<vmem>>, vector<1x1x256xf32>
    %68 = vector.shape_cast %67 : vector<1x1x256xf32> to vector<1x256xf32>
    %69 = vector.broadcast %68 : vector<1x256xf32> to vector<4x256xf32>
    %70 = arith.mulf %66, %69 : vector<4x256xf32>
    %c28 = arith.constant 28 : index
    %c0_36 = arith.constant 0 : index
    %71 = vector.load %arg10[%c28, %c0_36] : memref<72x256xf32, #tpu.memory_space<vmem>>, vector<4x256xf32>
    tpu.vector_store %arg10[%c28, %c0_36], %70 {strides = array<i32>} : memref<72x256xf32, #tpu.memory_space<vmem>>, vector<4x256xf32>,
    %c239_i32 = arith.constant 239 : i32
    %72 = tpu.dynamic_rotate %24 by %c239_i32 dim 1 : vector<4x256xf32>, i32 -> vector<4x256xf32>
    %c8_37 = arith.constant 8 : index
    %c0_38 = arith.constant 0 : index
    %c0_39 = arith.constant 0 : index
    %73 = vector.load %arg4[%c8_37, %c0_38, %c0_39] : memref<9x1x256xf32, #tpu.memory_space<vmem>>, vector<1x1x256xf32>
    %74 = vector.shape_cast %73 : vector<1x1x256xf32> to vector<1x256xf32>
    %75 = vector.broadcast %74 : vector<1x256xf32> to vector<4x256xf32>
    %76 = arith.mulf %72, %75 : vector<4x256xf32>
    %c32 = arith.constant 32 : index
    %c0_40 = arith.constant 0 : index
    %77 = vector.load %arg10[%c32, %c0_40] : memref<72x256xf32, #tpu.memory_space<vmem>>, vector<4x256xf32>
    tpu.vector_store %arg10[%c32, %c0_40], %76 {strides = array<i32>} : memref<72x256xf32, #tpu.memory_space<vmem>>, vector<4x256xf32>,
    %c0_41 = arith.constant 0 : index
    %c0_42 = arith.constant 0 : index
    %78 = vector.load %arg10[%c0_41, %c0_42] : memref<72x256xf32, #tpu.memory_space<vmem>>, vector<36x256xf32>
    %c0_43 = arith.constant 0 : index
    %c0_44 = arith.constant 0 : index
    %79 = vector.load %arg5[%c0_43, %c0_44] : memref<8x36xf32, #tpu.memory_space<vmem>>, vector<8x36xf32>
    %cst_45 = arith.constant dense<0.000000e+00> : vector<8x256xf32>
    %80 = tpu.matmul %79, %78, %cst_45 {dimension_numbers = #tpu.dot_dimension_numbers<[1], [0], [0], [1], [0, 0, 1, 1], [], []>} : vector<8x36xf32>, vector<36x256xf32>, vector<8x256xf32> -> vector<8x256xf32>
    %c0_46 = arith.constant 0 : index
    %c0_47 = arith.constant 0 : index
    %81 = vector.load %arg6[%c0_46, %c0_47] : memref<8x1xf32, #tpu.memory_space<vmem>>, vector<8x1xf32>
    %82 = vector.broadcast %81 : vector<8x1xf32> to vector<8x256xf32>
    %83 = arith.addf %80, %82 : vector<8x256xf32>
    %84 = arith.negf %83 : vector<8x256xf32>
    %85 = math.exp %84 : vector<8x256xf32>
    %cst_48 = arith.constant 1.000000e+00 : f32
    %86 = vector.broadcast %cst_48 : f32 to vector<8x256xf32>
    %87 = arith.addf %86, %85 : vector<8x256xf32>
    %88 = arith.divf %86, %87 : vector<8x256xf32>
    %89 = arith.mulf %83, %88 : vector<8x256xf32>
    %c17_i32_49 = arith.constant 17 : i32
    %90 = tpu.dynamic_rotate %89 by %c17_i32_49 dim 1 : vector<8x256xf32>, i32 -> vector<8x256xf32>
    %c0_50 = arith.constant 0 : index
    %c0_51 = arith.constant 0 : index
    %c0_52 = arith.constant 0 : index
    %91 = vector.load %arg4[%c0_50, %c0_51, %c0_52] : memref<9x1x256xf32, #tpu.memory_space<vmem>>, vector<1x1x256xf32>
    %92 = vector.shape_cast %91 : vector<1x1x256xf32> to vector<1x256xf32>
    %93 = vector.broadcast %92 : vector<1x256xf32> to vector<8x256xf32>
    %94 = arith.mulf %90, %93 : vector<8x256xf32>
    %c0_53 = arith.constant 0 : index
    %c0_54 = arith.constant 0 : index
    %95 = vector.load %arg10[%c0_53, %c0_54] : memref<72x256xf32, #tpu.memory_space<vmem>>, vector<8x256xf32>
    tpu.vector_store %arg10[%c0_53, %c0_54], %94 {strides = array<i32>} : memref<72x256xf32, #tpu.memory_space<vmem>>, vector<8x256xf32>,
    %c16_i32_55 = arith.constant 16 : i32
    %96 = tpu.dynamic_rotate %89 by %c16_i32_55 dim 1 : vector<8x256xf32>, i32 -> vector<8x256xf32>
    %c1_56 = arith.constant 1 : index
    %c0_57 = arith.constant 0 : index
    %c0_58 = arith.constant 0 : index
    %97 = vector.load %arg4[%c1_56, %c0_57, %c0_58] : memref<9x1x256xf32, #tpu.memory_space<vmem>>, vector<1x1x256xf32>
    %98 = vector.shape_cast %97 : vector<1x1x256xf32> to vector<1x256xf32>
    %99 = vector.broadcast %98 : vector<1x256xf32> to vector<8x256xf32>
    %100 = arith.mulf %96, %99 : vector<8x256xf32>
    %c8_59 = arith.constant 8 : index
    %c0_60 = arith.constant 0 : index
    %101 = vector.load %arg10[%c8_59, %c0_60] : memref<72x256xf32, #tpu.memory_space<vmem>>, vector<8x256xf32>
    tpu.vector_store %arg10[%c8_59, %c0_60], %100 {strides = array<i32>} : memref<72x256xf32, #tpu.memory_space<vmem>>, vector<8x256xf32>,
    %c15_i32_61 = arith.constant 15 : i32
    %102 = tpu.dynamic_rotate %89 by %c15_i32_61 dim 1 : vector<8x256xf32>, i32 -> vector<8x256xf32>
    %c2_62 = arith.constant 2 : index
    %c0_63 = arith.constant 0 : index
    %c0_64 = arith.constant 0 : index
    %103 = vector.load %arg4[%c2_62, %c0_63, %c0_64] : memref<9x1x256xf32, #tpu.memory_space<vmem>>, vector<1x1x256xf32>
    %104 = vector.shape_cast %103 : vector<1x1x256xf32> to vector<1x256xf32>
    %105 = vector.broadcast %104 : vector<1x256xf32> to vector<8x256xf32>
    %106 = arith.mulf %102, %105 : vector<8x256xf32>
    %c16_65 = arith.constant 16 : index
    %c0_66 = arith.constant 0 : index
    %107 = vector.load %arg10[%c16_65, %c0_66] : memref<72x256xf32, #tpu.memory_space<vmem>>, vector<8x256xf32>
    tpu.vector_store %arg10[%c16_65, %c0_66], %106 {strides = array<i32>} : memref<72x256xf32, #tpu.memory_space<vmem>>, vector<8x256xf32>,
    %c1_i32_67 = arith.constant 1 : i32
    %108 = tpu.dynamic_rotate %89 by %c1_i32_67 dim 1 : vector<8x256xf32>, i32 -> vector<8x256xf32>
    %c3_68 = arith.constant 3 : index
    %c0_69 = arith.constant 0 : index
    %c0_70 = arith.constant 0 : index
    %109 = vector.load %arg4[%c3_68, %c0_69, %c0_70] : memref<9x1x256xf32, #tpu.memory_space<vmem>>, vector<1x1x256xf32>
    %110 = vector.shape_cast %109 : vector<1x1x256xf32> to vector<1x256xf32>
    %111 = vector.broadcast %110 : vector<1x256xf32> to vector<8x256xf32>
    %112 = arith.mulf %108, %111 : vector<8x256xf32>
    %c24_71 = arith.constant 24 : index
    %c0_72 = arith.constant 0 : index
    %113 = vector.load %arg10[%c24_71, %c0_72] : memref<72x256xf32, #tpu.memory_space<vmem>>, vector<8x256xf32>
    tpu.vector_store %arg10[%c24_71, %c0_72], %112 {strides = array<i32>} : memref<72x256xf32, #tpu.memory_space<vmem>>, vector<8x256xf32>,
    %c4_73 = arith.constant 4 : index
    %c0_74 = arith.constant 0 : index
    %c0_75 = arith.constant 0 : index
    %114 = vector.load %arg4[%c4_73, %c0_74, %c0_75] : memref<9x1x256xf32, #tpu.memory_space<vmem>>, vector<1x1x256xf32>
    %115 = vector.shape_cast %114 : vector<1x1x256xf32> to vector<1x256xf32>
    %116 = vector.broadcast %115 : vector<1x256xf32> to vector<8x256xf32>
    %117 = arith.mulf %89, %116 : vector<8x256xf32>
    %c32_76 = arith.constant 32 : index
    %c0_77 = arith.constant 0 : index
    %118 = vector.load %arg10[%c32_76, %c0_77] : memref<72x256xf32, #tpu.memory_space<vmem>>, vector<8x256xf32>
    tpu.vector_store %arg10[%c32_76, %c0_77], %117 {strides = array<i32>} : memref<72x256xf32, #tpu.memory_space<vmem>>, vector<8x256xf32>,
    %c255_i32_78 = arith.constant 255 : i32
    %119 = tpu.dynamic_rotate %89 by %c255_i32_78 dim 1 : vector<8x256xf32>, i32 -> vector<8x256xf32>
    %c5_79 = arith.constant 5 : index
    %c0_80 = arith.constant 0 : index
    %c0_81 = arith.constant 0 : index
    %120 = vector.load %arg4[%c5_79, %c0_80, %c0_81] : memref<9x1x256xf32, #tpu.memory_space<vmem>>, vector<1x1x256xf32>
    %121 = vector.shape_cast %120 : vector<1x1x256xf32> to vector<1x256xf32>
    %122 = vector.broadcast %121 : vector<1x256xf32> to vector<8x256xf32>
    %123 = arith.mulf %119, %122 : vector<8x256xf32>
    %c40 = arith.constant 40 : index
    %c0_82 = arith.constant 0 : index
    %124 = vector.load %arg10[%c40, %c0_82] : memref<72x256xf32, #tpu.memory_space<vmem>>, vector<8x256xf32>
    tpu.vector_store %arg10[%c40, %c0_82], %123 {strides = array<i32>} : memref<72x256xf32, #tpu.memory_space<vmem>>, vector<8x256xf32>,
    %c241_i32_83 = arith.constant 241 : i32
    %125 = tpu.dynamic_rotate %89 by %c241_i32_83 dim 1 : vector<8x256xf32>, i32 -> vector<8x256xf32>
    %c6_84 = arith.constant 6 : index
    %c0_85 = arith.constant 0 : index
    %c0_86 = arith.constant 0 : index
    %126 = vector.load %arg4[%c6_84, %c0_85, %c0_86] : memref<9x1x256xf32, #tpu.memory_space<vmem>>, vector<1x1x256xf32>
    %127 = vector.shape_cast %126 : vector<1x1x256xf32> to vector<1x256xf32>
    %128 = vector.broadcast %127 : vector<1x256xf32> to vector<8x256xf32>
    %129 = arith.mulf %125, %128 : vector<8x256xf32>
    %c48 = arith.constant 48 : index
    %c0_87 = arith.constant 0 : index
    %130 = vector.load %arg10[%c48, %c0_87] : memref<72x256xf32, #tpu.memory_space<vmem>>, vector<8x256xf32>
    tpu.vector_store %arg10[%c48, %c0_87], %129 {strides = array<i32>} : memref<72x256xf32, #tpu.memory_space<vmem>>, vector<8x256xf32>,
    %c240_i32_88 = arith.constant 240 : i32
    %131 = tpu.dynamic_rotate %89 by %c240_i32_88 dim 1 : vector<8x256xf32>, i32 -> vector<8x256xf32>
    %c7_89 = arith.constant 7 : index
    %c0_90 = arith.constant 0 : index
    %c0_91 = arith.constant 0 : index
    %132 = vector.load %arg4[%c7_89, %c0_90, %c0_91] : memref<9x1x256xf32, #tpu.memory_space<vmem>>, vector<1x1x256xf32>
    %133 = vector.shape_cast %132 : vector<1x1x256xf32> to vector<1x256xf32>
    %134 = vector.broadcast %133 : vector<1x256xf32> to vector<8x256xf32>
    %135 = arith.mulf %131, %134 : vector<8x256xf32>
    %c56 = arith.constant 56 : index
    %c0_92 = arith.constant 0 : index
    %136 = vector.load %arg10[%c56, %c0_92] : memref<72x256xf32, #tpu.memory_space<vmem>>, vector<8x256xf32>
    tpu.vector_store %arg10[%c56, %c0_92], %135 {strides = array<i32>} : memref<72x256xf32, #tpu.memory_space<vmem>>, vector<8x256xf32>,
    %c239_i32_93 = arith.constant 239 : i32
    %137 = tpu.dynamic_rotate %89 by %c239_i32_93 dim 1 : vector<8x256xf32>, i32 -> vector<8x256xf32>
    %c8_94 = arith.constant 8 : index
    %c0_95 = arith.constant 0 : index
    %c0_96 = arith.constant 0 : index
    %138 = vector.load %arg4[%c8_94, %c0_95, %c0_96] : memref<9x1x256xf32, #tpu.memory_space<vmem>>, vector<1x1x256xf32>
    %139 = vector.shape_cast %138 : vector<1x1x256xf32> to vector<1x256xf32>
    %140 = vector.broadcast %139 : vector<1x256xf32> to vector<8x256xf32>
    %141 = arith.mulf %137, %140 : vector<8x256xf32>
    %c64 = arith.constant 64 : index
    %c0_97 = arith.constant 0 : index
    %142 = vector.load %arg10[%c64, %c0_97] : memref<72x256xf32, #tpu.memory_space<vmem>>, vector<8x256xf32>
    tpu.vector_store %arg10[%c64, %c0_97], %141 {strides = array<i32>} : memref<72x256xf32, #tpu.memory_space<vmem>>, vector<8x256xf32>,
    %c0_98 = arith.constant 0 : index
    %c0_99 = arith.constant 0 : index
    %143 = vector.load %arg10[%c0_98, %c0_99] : memref<72x256xf32, #tpu.memory_space<vmem>>, vector<72x256xf32>
    %c0_100 = arith.constant 0 : index
    %c0_101 = arith.constant 0 : index
    %144 = vector.load %arg7[%c0_100, %c0_101] : memref<8x72xf32, #tpu.memory_space<vmem>>, vector<8x72xf32>
    %cst_102 = arith.constant dense<0.000000e+00> : vector<8x256xf32>
    %145 = tpu.matmul %144, %143, %cst_102 {dimension_numbers = #tpu.dot_dimension_numbers<[1], [0], [0], [1], [0, 0, 1, 1], [], []>} : vector<8x72xf32>, vector<72x256xf32>, vector<8x256xf32> -> vector<8x256xf32>
    %c0_103 = arith.constant 0 : index
    %c0_104 = arith.constant 0 : index
    %146 = vector.load %arg8[%c0_103, %c0_104] : memref<8x1xf32, #tpu.memory_space<vmem>>, vector<8x1xf32>
    %147 = vector.broadcast %146 : vector<8x1xf32> to vector<8x256xf32>
    %148 = arith.addf %145, %147 : vector<8x256xf32>
    %149 = arith.negf %148 : vector<8x256xf32>
    %150 = math.exp %149 : vector<8x256xf32>
    %cst_105 = arith.constant 1.000000e+00 : f32
    %151 = vector.broadcast %cst_105 : f32 to vector<8x256xf32>
    %152 = arith.addf %151, %150 : vector<8x256xf32>
    %153 = arith.divf %151, %152 : vector<8x256xf32>
    %154 = arith.mulf %148, %153 : vector<8x256xf32>
    %c0_106 = arith.constant 0 : index
    %c0_107 = arith.constant 0 : index
    %c0_108 = arith.constant 0 : index
    %155 = vector.load %arg9[%c0_106, %c0_107, %c0_108] : memref<1x8x256xf32, #tpu.memory_space<vmem>>, vector<1x8x256xf32>
    %156 = vector.shape_cast %155 : vector<1x8x256xf32> to vector<8x256xf32>
    %157 = vector.shape_cast %154 : vector<8x256xf32> to vector<1x8x256xf32>
    tpu.vector_store %arg9[%c0_106, %c0_107, %c0_108], %157 {strides = array<i32>} : memref<1x8x256xf32, #tpu.memory_space<vmem>>, vector<1x8x256xf32>,
    return
  }
  func.func @transform_0(%arg0: i32) -> (i32, i32, i32) {
    %c0_i32 = arith.constant 0 : i32
    %c0_i32_0 = arith.constant 0 : i32
    %c0_i32_1 = arith.constant 0 : i32
    return %arg0, %c0_i32, %c0_i32_0 : i32, i32, i32
  }
  func.func @transform_1(%arg0: i32) -> (i32, i32) {
    %c0_i32 = arith.constant 0 : i32
    %c0_i32_0 = arith.constant 0 : i32
    %c0_i32_1 = arith.constant 0 : i32
    return %c0_i32, %c0_i32_0 : i32, i32
  }
  func.func @transform_2(%arg0: i32) -> (i32, i32) {
    %c0_i32 = arith.constant 0 : i32
    %c0_i32_0 = arith.constant 0 : i32
    %c0_i32_1 = arith.constant 0 : i32
    return %c0_i32, %c0_i32_0 : i32, i32
  }
  func.func @transform_3(%arg0: i32) -> (i32, i32, i32) {
    %c0_i32 = arith.constant 0 : i32
    %c0_i32_0 = arith.constant 0 : i32
    %c0_i32_1 = arith.constant 0 : i32
    %c0_i32_2 = arith.constant 0 : i32
    return %c0_i32, %c0_i32_0, %c0_i32_1 : i32, i32, i32
  }
  func.func @transform_4(%arg0: i32) -> (i32, i32) {
    %c0_i32 = arith.constant 0 : i32
    %c0_i32_0 = arith.constant 0 : i32
    %c0_i32_1 = arith.constant 0 : i32
    return %c0_i32, %c0_i32_0 : i32, i32
  }
  func.func @transform_5(%arg0: i32) -> (i32, i32) {
    %c0_i32 = arith.constant 0 : i32
    %c0_i32_0 = arith.constant 0 : i32
    %c0_i32_1 = arith.constant 0 : i32
    return %c0_i32, %c0_i32_0 : i32, i32
  }
  func.func @transform_6(%arg0: i32) -> (i32, i32) {
    %c0_i32 = arith.constant 0 : i32
    %c0_i32_0 = arith.constant 0 : i32
    %c0_i32_1 = arith.constant 0 : i32
    return %c0_i32, %c0_i32_0 : i32, i32
  }
  func.func @transform_7(%arg0: i32) -> (i32, i32) {
    %c0_i32 = arith.constant 0 : i32
    %c0_i32_0 = arith.constant 0 : i32
    %c0_i32_1 = arith.constant 0 : i32
    return %c0_i32, %c0_i32_0 : i32, i32
  }
  func.func @transform_8(%arg0: i32) -> (i32, i32, i32) {
    %c0_i32 = arith.constant 0 : i32
    %c0_i32_0 = arith.constant 0 : i32
    %c0_i32_1 = arith.constant 0 : i32
    return %arg0, %c0_i32, %c0_i32_0 : i32, i32, i32
  }
}

</mosaic_0001>

<llo_original>
// kernel: tpu_custom_call.1
$region0: #{tpu_custom_call.1}
  #allocation0 [shape = 'u32[]', space=smem, size = 0x4, offset = 0x4, fixed_abs, tag = 'smem constant byte address 0x4 - core index']
  #allocation1 [shape = 'u32[144,128]{1,0:T(1,128)}', space=vmem, size = 0x12000, scoped, tag = 'internal scratch']
  #allocation2 [shape = 'f32[72,256]{1,0:T(8,128)}', space=vmem, size = 0x12000, scoped, tag = 'scratch operand']
  %s0 = inlined_call_operand.hbm [shape: f32[2,4,256], index: 0, kind: input, shape index: {}]
  %s1 = inlined_call_operand.vmem [shape: f32[4,256], index: 1, kind: input, shape index: {}]
  %s2 = inlined_call_operand.hbm [shape: f32[4,256], index: 2, kind: input, shape index: {}]
  %s3 = inlined_call_operand.vmem [shape: f32[9,1,256], index: 3, kind: input, shape index: {}]
  %s4 = inlined_call_operand.hbm [shape: f32[8,36], index: 4, kind: input, shape index: {}]
  %s5 = inlined_call_operand.vmem [shape: f32[8,1], index: 5, kind: input, shape index: {}]
  %s6 = inlined_call_operand.vmem [shape: f32[8,72], index: 6, kind: input, shape index: {}]
  %s7 = inlined_call_operand.vmem [shape: f32[8,1], index: 7, kind: input, shape index: {}]
  %s8 = inlined_call_operand.hbm [shape: f32[2,8,256], index: 8, kind: output, shape index: {}]
  %s9 = sld [smem:[#allocation0]]
  $region77: #{tpu_custom_call.1} parent=0
    _
  %s11 = ssub.s32 1, %s9
  %s12 = scalar_select 0, %s11, %s9
  $region1: #{tpu_custom_call.1} parent=0
    #allocation3 [shape = 'u8[8192]{0}', space=vmem, size = 0x2000, scoped, tag = 'input window, operand 0']
    #allocation4 [shape = 's32[2]{0}', space=sflag, size = 0x8, scoped, tag = 'scoped memory for tpu_custom_call.1']
    #allocation5 [shape = 's32[2]{0}', space=sflag, size = 0x8, scoped, tag = 'scoped memory for tpu_custom_call.1']
    #allocation6 [shape = 'u8[4096]{0}', space=vmem, size = 0x1000, scoped, tag = 'input window, operand 2, single buffered']
    #allocation7 [shape = 's32[1]{0}', space=sflag, size = 0x4, scoped, tag = 'scoped memory for tpu_custom_call.1']
    #allocation8 [shape = 'u8[4096]{0}', space=vmem, size = 0x1000, scoped, tag = 'input window, operand 4, single buffered']
    #allocation9 [shape = 'u8[16384]{0}', space=vmem, size = 0x4000, scoped, tag = 'output window, operand 0']
    %13 = vsyncpa [#allocation4], 0
    %s14 = scalar_lea.sflag [#allocation4], 1
    %15 = vsyncpa %s14, 0
    %16 = vsyncpa [#allocation7], 0
    %17 = vsyncpa [#allocation5], 0
    %s18 = scalar_lea.sflag [#allocation5], 1
    %19 = vsyncpa %s18, 0
    loop: start=0, step=1, limit=4
    $region2: #{tpu_custom_call.1} parent=1 // loop_pre_header
      _
    $region3: #{tpu_custom_call.1} parent=1 // loop_header
      %s21 = sphi 0, %s25
      %p22 = scmp.ge.s32.totalorder %s21, 4
      %s31 = sphi 0, %s33
      %s34 = sphi 0, %s31
      %s35 = sphi 0, %s34
      %s51 = sphi 0, %s35
      %s55 = sphi 0, %s55
      %s57 = sphi 0, %s55
      %s58 = sphi 0, %s57
      %s72 = sphi 0, %s58
      %s76 = sphi 0, %s76
      %s78 = sphi 0, %s76
      %s79 = sphi 0, %s78
      %s93 = sphi 0, %s79
      %s97 = sphi 0, %s97
      %s99 = sphi 0, %s97
      %s100 = sphi 0, %s99
      %s114 = sphi 0, %s100
      %s118 = sphi 0, %s118
      %s120 = sphi 0, %s118
      %s121 = sphi 0, %s120
      %s135 = sphi 0, %s121
      %s139 = sphi 0, %s139
      %s141 = sphi 0, %s139
      %s142 = sphi 0, %s141
      %s156 = sphi 0, %s142
      %s160 = sphi 0, %s160
      %s162 = sphi 0, %s160
      %s163 = sphi 0, %s162
      %s177 = sphi 0, %s163
      %s181 = sphi 0, %s181
      %s183 = sphi 0, %s181
      %s184 = sphi 0, %s183
      %s198 = sphi 0, %s184
      %s204 = sphi 0, %s206
      %s207 = sphi 0, %s204
      %s208 = sphi 0, %s207
      %s224 = sphi 0, %s208
    $region4: #{tpu_custom_call.1} parent=1 // loop_header_branch
      %24 = sbr.rel (%p22) target = $region8
    $region5: #{tpu_custom_call.1} parent=1 // loop_body
      %s26 = ssub.s32 %s21, 1
      %s27 = ssub.s32 %s21, 2
      %s28 = sadd.s32 %s21, 1
      %s29 = ssub.s32 %s21, %s28
      %p30 = scmp.eq.s32.totalorder %s29, 0
      %s32 = sadd.s32 %s31, 1
      %s33 = scalar_select %p30, %s31, %s32
      %p36 = pneg %p30
      %p37 = scmp.eq.s32.totalorder %s21, 1
      %p38 = por %p36, %p37
      %p39 = scmp.ne.s32.totalorder %s31, %s34
      %p40 = scmp.eq.s32.totalorder %s21, 0
      %p41 = por %p39, %p40
      %p42 = scmp.ne.s32.totalorder %s31, %s34
      %p43 = scmp.eq.s32.totalorder %s26, 1
      %p44 = por %p42, %p43
      %p45 = scmp.ne.s32.totalorder %s34, %s35
      %p46 = scmp.eq.s32.totalorder %s26, 0
      %p47 = por %p45, %p46
      %p48 = scmp.ne.s32.totalorder %s34, %s35
      %p49 = scmp.eq.s32.totalorder %s27, 1
      %p50 = por %p48, %p49
      %p52 = scmp.ne.s32.totalorder %s35, %s51
      %p53 = scmp.eq.s32.totalorder %s27, 0
      %p54 = por %p52, %p53
      %s56 = sadd.s32 %s55, 1
      %p59 = scmp.eq.s32.totalorder %s21, 1
      %p60 = scmp.ne.s32.totalorder %s55, %s57
      %p61 = scmp.eq.s32.totalorder %s21, 0
      %p62 = por %p60, %p61
      %p63 = scmp.ne.s32.totalorder %s55, %s57
      %p64 = scmp.eq.s32.totalorder %s26, 1
      %p65 = por %p63, %p64
      %p66 = scmp.ne.s32.totalorder %s57, %s58
      %p67 = scmp.eq.s32.totalorder %s26, 0
      %p68 = por %p66, %p67
      %p69 = scmp.ne.s32.totalorder %s57, %s58
      %p70 = scmp.eq.s32.totalorder %s27, 1
      %p71 = por %p69, %p70
      %p73 = scmp.ne.s32.totalorder %s58, %s72
      %p74 = scmp.eq.s32.totalorder %s27, 0
      %p75 = por %p73, %p74
      %s77 = sadd.s32 %s76, 1
      %p80 = scmp.eq.s32.totalorder %s21, 1
      %p81 = scmp.ne.s32.totalorder %s76, %s78
      %p82 = scmp.eq.s32.totalorder %s21, 0
      %p83 = por %p81, %p82
      %p84 = scmp.ne.s32.totalorder %s76, %s78
      %p85 = scmp.eq.s32.totalorder %s26, 1
      %p86 = por %p84, %p85
      %p87 = scmp.ne.s32.totalorder %s78, %s79
      %p88 = scmp.eq.s32.totalorder %s26, 0
      %p89 = por %p87, %p88
      %p90 = scmp.ne.s32.totalorder %s78, %s79
      %p91 = scmp.eq.s32.totalorder %s27, 1
      %p92 = por %p90, %p91
      %p94 = scmp.ne.s32.totalorder %s79, %s93
      %p95 = scmp.eq.s32.totalorder %s27, 0
      %p96 = por %p94, %p95
      %s98 = sadd.s32 %s97, 1
      %p101 = scmp.eq.s32.totalorder %s21, 1
      %p102 = scmp.ne.s32.totalorder %s97, %s99
      %p103 = scmp.eq.s32.totalorder %s21, 0
      %p104 = por %p102, %p103
      %p105 = scmp.ne.s32.totalorder %s97, %s99
      %p106 = scmp.eq.s32.totalorder %s26, 1
      %p107 = por %p105, %p106
      %p108 = scmp.ne.s32.totalorder %s99, %s100
      %p109 = scmp.eq.s32.totalorder %s26, 0
      %p110 = por %p108, %p109
      %p111 = scmp.ne.s32.totalorder %s99, %s100
      %p112 = scmp.eq.s32.totalorder %s27, 1
      %p113 = por %p111, %p112
      %p115 = scmp.ne.s32.totalorder %s100, %s114
      %p116 = scmp.eq.s32.totalorder %s27, 0
      %p117 = por %p115, %p116
      %s119 = sadd.s32 %s118, 1
      %p122 = scmp.eq.s32.totalorder %s21, 1
      %p123 = scmp.ne.s32.totalorder %s118, %s120
      %p124 = scmp.eq.s32.totalorder %s21, 0
      %p125 = por %p123, %p124
      %p126 = scmp.ne.s32.totalorder %s118, %s120
      %p127 = scmp.eq.s32.totalorder %s26, 1
      %p128 = por %p126, %p127
      %p129 = scmp.ne.s32.totalorder %s120, %s121
      %p130 = scmp.eq.s32.totalorder %s26, 0
      %p131 = por %p129, %p130
      %p132 = scmp.ne.s32.totalorder %s120, %s121
      %p133 = scmp.eq.s32.totalorder %s27, 1
      %p134 = por %p132, %p133
      %p136 = scmp.ne.s32.totalorder %s121, %s135
      %p137 = scmp.eq.s32.totalorder %s27, 0
      %p138 = por %p136, %p137
      %s140 = sadd.s32 %s139, 1
      %p143 = scmp.eq.s32.totalorder %s21, 1
      %p144 = scmp.ne.s32.totalorder %s139, %s141
      %p145 = scmp.eq.s32.totalorder %s21, 0
      %p146 = por %p144, %p145
      %p147 = scmp.ne.s32.totalorder %s139, %s141
      %p148 = scmp.eq.s32.totalorder %s26, 1
      %p149 = por %p147, %p148
      %p150 = scmp.ne.s32.totalorder %s141, %s142
      %p151 = scmp.eq.s32.totalorder %s26, 0
      %p152 = por %p150, %p151
      %p153 = scmp.ne.s32.totalorder %s141, %s142
      %p154 = scmp.eq.s32.totalorder %s27, 1
      %p155 = por %p153, %p154
      %p157 = scmp.ne.s32.totalorder %s142, %s156
      %p158 = scmp.eq.s32.totalorder %s27, 0
      %p159 = por %p157, %p158
      %s161 = sadd.s32 %s160, 1
      %p164 = scmp.eq.s32.totalorder %s21, 1
      %p165 = scmp.ne.s32.totalorder %s160, %s162
      %p166 = scmp.eq.s32.totalorder %s21, 0
      %p167 = por %p165, %p166
      %p168 = scmp.ne.s32.totalorder %s160, %s162
      %p169 = scmp.eq.s32.totalorder %s26, 1
      %p170 = por %p168, %p169
      %p171 = scmp.ne.s32.totalorder %s162, %s163
      %p172 = scmp.eq.s32.totalorder %s26, 0
      %p173 = por %p171, %p172
      %p174 = scmp.ne.s32.totalorder %s162, %s163
      %p175 = scmp.eq.s32.totalorder %s27, 1
      %p176 = por %p174, %p175
      %p178 = scmp.ne.s32.totalorder %s163, %s177
      %p179 = scmp.eq.s32.totalorder %s27, 0
      %p180 = por %p178, %p179
      %s182 = sadd.s32 %s181, 1
      %p185 = scmp.eq.s32.totalorder %s21, 1
      %p186 = scmp.ne.s32.totalorder %s181, %s183
      %p187 = scmp.eq.s32.totalorder %s21, 0
      %p188 = por %p186, %p187
      %p189 = scmp.ne.s32.totalorder %s181, %s183
      %p190 = scmp.eq.s32.totalorder %s26, 1
      %p191 = por %p189, %p190
      %p192 = scmp.ne.s32.totalorder %s183, %s184
      %p193 = scmp.eq.s32.totalorder %s26, 0
      %p194 = por %p192, %p193
      %p195 = scmp.ne.s32.totalorder %s183, %s184
      %p196 = scmp.eq.s32.totalorder %s27, 1
      %p197 = por %p195, %p196
      %p199 = scmp.ne.s32.totalorder %s184, %s198
      %p200 = scmp.eq.s32.totalorder %s27, 0
      %p201 = por %p199, %p200
      %s202 = ssub.s32 %s21, %s28
      %p203 = scmp.eq.s32.totalorder %s202, 0
      %s205 = sadd.s32 %s204, 1
      %s206 = scalar_select %p203, %s204, %s205
      %p209 = pneg %p203
      %p210 = scmp.eq.s32.totalorder %s21, 1
      %p211 = por %p209, %p210
      %p212 = scmp.ne.s32.totalorder %s204, %s207
      %p213 = scmp.eq.s32.totalorder %s21, 0
      %p214 = por %p212, %p213
      %p215 = scmp.ne.s32.totalorder %s204, %s207
      %p216 = scmp.eq.s32.totalorder %s26, 1
      %p217 = por %p215, %p216
      %p218 = scmp.ne.s32.totalorder %s207, %s208
      %p219 = scmp.eq.s32.totalorder %s26, 0
      %p220 = por %p218, %p219
      %p221 = scmp.ne.s32.totalorder %s207, %s208
      %p222 = scmp.eq.s32.totalorder %s27, 1
      %p223 = por %p221, %p222
      %p225 = scmp.ne.s32.totalorder %s208, %s224
      %p226 = scmp.eq.s32.totalorder %s27, 0
      %p227 = por %p225, %p226
      %p228 = scmp.le.s32.totalorder 1, %s21
      %p229 = scmp.lt.s32.totalorder %s21, 3
      %p230 = pnand %p228, %p229
      %p231 = pneg %p230
      // Predicated region
      $region9: #{tpu_custom_call.1} parent=5 // pred_check
        _
      $region10: #{tpu_custom_call.1} parent=5 // pred_check_branch
        %233 = sbr.rel (%p230) target = $region12
      $region11: #{tpu_custom_call.1} parent=5 // pred_region
        %s234 = ssub.s32 %s21, 1
        // Predicated region
        $region13: #{tpu_custom_call.1} parent=11 // pred_check
          %p235 = pneg %p68
        $region14: #{tpu_custom_call.1} parent=11 // pred_check_branch
          %237 = sbr.rel (%p235) target = $region16
        $region15: #{tpu_custom_call.1} parent=11 // pred_region
          _
        $region16: #{tpu_custom_call.1} parent=11 // pred_fallthru
          _
        // Predicated region
        $region17: #{tpu_custom_call.1} parent=11 // pred_check
          %p238 = pneg %p89
        $region18: #{tpu_custom_call.1} parent=11 // pred_check_branch
          %240 = sbr.rel (%p238) target = $region20
        $region19: #{tpu_custom_call.1} parent=11 // pred_region
          %s242 = ssub.s32 128, 128
          %243 = vsyncadd [#allocation7], %s242
          %s245 = sshll.u32 [#allocation6], 4
          %s246 = int_to_ptr.vmem [resolvable:$true] %s245
          %248 = dma.hbm_to_vmem [thread:$0]  %s2, 128, %s246, [#allocation7]
        $region20: #{tpu_custom_call.1} parent=11 // pred_fallthru
          _
        // Predicated region
        $region21: #{tpu_custom_call.1} parent=11 // pred_check
          %p249 = pneg %p110
        $region22: #{tpu_custom_call.1} parent=11 // pred_check_branch
          %251 = sbr.rel (%p249) target = $region24
        $region23: #{tpu_custom_call.1} parent=11 // pred_region
          _
        $region24: #{tpu_custom_call.1} parent=11 // pred_fallthru
          _
        // Predicated region
        $region25: #{tpu_custom_call.1} parent=11 // pred_check
          %p252 = pneg %p131
        $region26: #{tpu_custom_call.1} parent=11 // pred_check_branch
          %254 = sbr.rel (%p252) target = $region28
        $region27: #{tpu_custom_call.1} parent=11 // pred_region
          %s256 = ssub.s32 128, 128
          %257 = vsyncadd [#allocation7], %s256
          %s259 = sshll.u32 [#allocation8], 4
          %s260 = int_to_ptr.vmem [resolvable:$true] %s259
          %262 = dma.hbm_to_vmem [thread:$0]  %s4, 128, %s260, [#allocation7]
        $region28: #{tpu_custom_call.1} parent=11 // pred_fallthru
          _
        // Predicated region
        $region29: #{tpu_custom_call.1} parent=11 // pred_check
          %p263 = pneg %p152
        $region30: #{tpu_custom_call.1} parent=11 // pred_check_branch
          %265 = sbr.rel (%p263) target = $region32
        $region31: #{tpu_custom_call.1} parent=11 // pred_region
          _
        $region32: #{tpu_custom_call.1} parent=11 // pred_fallthru
          _
        // Predicated region
        $region33: #{tpu_custom_call.1} parent=11 // pred_check
          %p266 = pneg %p173
        $region34: #{tpu_custom_call.1} parent=11 // pred_check_branch
          %268 = sbr.rel (%p266) target = $region36
        $region35: #{tpu_custom_call.1} parent=11 // pred_region
          _
        $region36: #{tpu_custom_call.1} parent=11 // pred_fallthru
          _
        // Predicated region
        $region37: #{tpu_custom_call.1} parent=11 // pred_check
          %p269 = pneg %p194
        $region38: #{tpu_custom_call.1} parent=11 // pred_check_branch
          %271 = sbr.rel (%p269) target = $region40
        $region39: #{tpu_custom_call.1} parent=11 // pred_region
          _
        $region40: #{tpu_custom_call.1} parent=11 // pred_fallthru
          _
      $region12: #{tpu_custom_call.1} parent=5 // pred_fallthru
        _
      %p272 = scmp.lt.s32.totalorder %s21, 2
      // Predicated region
      $region41: #{tpu_custom_call.1} parent=5 // pred_check
        %p273 = pneg %p272
      $region42: #{tpu_custom_call.1} parent=5 // pred_check_branch
        %275 = sbr.rel (%p273) target = $region44
      $region43: #{tpu_custom_call.1} parent=5 // pred_region
        // Predicated region
        $region45: #{tpu_custom_call.1} parent=43 // pred_check
          %p276 = pneg %p41
        $region46: #{tpu_custom_call.1} parent=43 // pred_check_branch
          %278 = sbr.rel (%p276) target = $region48
        $region47: #{tpu_custom_call.1} parent=43 // pred_region
          %s279 = sand.u32 %s31, 1
          %s280 = scalar_lea.sflag [#allocation4], %s279
          %s281 = sand.u32 %s31, 1
          %s282 = smul.addr %s281, 8
          %s283 = scalar_lea.vmem [#allocation3], %s282
          %s285 = ssub.s32 128, 128
          %286 = vsyncadd %s280, %s285
          %s287 = smul.addr %s21, 2
          %s288 = smul.addr %s287, 64
          %s289 = scalar_lea.hbm %s0, %s288
          %s291 = sshll.u32 %s283, 4
          %s292 = int_to_ptr.vmem [resolvable:$true] %s291
          %294 = dma.hbm_to_vmem [thread:$0]  %s289, 128, %s292, %s280
        $region48: #{tpu_custom_call.1} parent=43 // pred_fallthru
          _
      $region44: #{tpu_custom_call.1} parent=5 // pred_fallthru
        _
      %p295 = scmp.le.s32.totalorder 1, %s21
      %p296 = scmp.lt.s32.totalorder %s21, 3
      %p297 = pnand %p295, %p296
      %p298 = pneg %p297
      // Predicated region
      $region49: #{tpu_custom_call.1} parent=5 // pred_check
        _
      $region50: #{tpu_custom_call.1} parent=5 // pred_check_branch
        %300 = sbr.rel (%p297) target = $region52
      $region51: #{tpu_custom_call.1} parent=5 // pred_region
        %s301 = ssub.s32 %s21, 1
        %s302 = sand.u32 %s34, 1
        %s303 = scalar_lea.sflag [#allocation4], %s302
        %s304 = sand.u32 %s34, 1
        %s305 = smul.addr %s304, 8
        %s306 = scalar_lea.vmem [#allocation3], %s305
        // Predicated region
        $region53: #{tpu_custom_call.1} parent=51 // pred_check
          %p307 = pneg %p47
        $region54: #{tpu_custom_call.1} parent=51 // pred_check_branch
          %309 = sbr.rel (%p307) target = $region56
        $region55: #{tpu_custom_call.1} parent=51 // pred_region
          %310 = dma.done %s303, 128
        $region56: #{tpu_custom_call.1} parent=51 // pred_fallthru
          _
        // Predicated region
        $region57: #{tpu_custom_call.1} parent=51 // pred_check
          %p311 = pneg %p89
        $region58: #{tpu_custom_call.1} parent=51 // pred_check_branch
          %313 = sbr.rel (%p311) target = $region60
        $region59: #{tpu_custom_call.1} parent=51 // pred_region
          %314 = dma.done [#allocation7], 128
        $region60: #{tpu_custom_call.1} parent=51 // pred_fallthru
          _
        // Predicated region
        $region61: #{tpu_custom_call.1} parent=51 // pred_check
          %p315 = pneg %p131
        $region62: #{tpu_custom_call.1} parent=51 // pred_check_branch
          %317 = sbr.rel (%p315) target = $region64
        $region63: #{tpu_custom_call.1} parent=51 // pred_region
          %318 = dma.done [#allocation7], 128
        $region64: #{tpu_custom_call.1} parent=51 // pred_fallthru
          _
        %s319 = sand.u32 %s34, 1
        %s320 = scalar_lea.sflag [#allocation4], %s319
        %s321 = sand.u32 %s34, 1
        %s322 = smul.addr %s321, 8
        %s323 = scalar_lea.vmem [#allocation3], %s322
        %p324 = pneg %p47
        %p325 = pneg %p44
        %p326 = pneg %p68
        %p327 = pneg %p65
        %p328 = pneg %p89
        %p329 = pneg %p86
        %p330 = pneg %p110
        %p331 = pneg %p107
        %p332 = pneg %p131
        %p333 = pneg %p128
        %p334 = pneg %p152
        %p335 = pneg %p149
        %p336 = pneg %p173
        %p337 = pneg %p170
        %p338 = pneg %p194
        %p339 = pneg %p191
        %p340 = pneg %p220
        %p341 = pneg %p217
        %s342 = sand.u32 %s207, 1
        %s343 = scalar_lea.sflag [#allocation5], %s342
        %s344 = sand.u32 %s207, 1
        %s345 = smul.addr %s344, 16
        %s346 = scalar_lea.vmem [#allocation9], %s345
        %v347 = vld [vmem:[%s306] sm:$0xff]
        %v349 = vcombine.high %v347, %v347
        %vm351 = vcmask 1043456
        %v352 = vsel %vm351, %v347, 0.0
        %v353 = vsel %vm351, %v349, 0.0
        %v354 = vadd.f32 %v352, %v353
        %355 = vadd.xlane.f32.xlu0 %v354
        %v356 = vpop.xlane.xlu0 %355
        %v357 = vrot.slane %v356, 4
        %v358 = vadd.f32 %v356, %v357
        %v359 = vrot.slane %v358, 2
        %v360 = vadd.f32 %v358, %v359
        %v361 = vrot.slane %v360, 1
        %v362 = vadd.f32 %v360, %v361
        %s363 = vtos %v362
        %v364 = vrcp.pop 1024.0
        %s365 = vtos %v364
        %s366 = smul.f32 %s363, %s365
        %v367 = vstv %s366
        %v368 = vsub.f32 %v347, %v367
        %v369 = vmul.f32 %v368, %v368
        %v371 = vcombine.high %v369, %v369
        %v373 = vsel %vm351, %v369, 0.0
        %v374 = vsel %vm351, %v371, 0.0
        %v375 = vadd.f32 %v373, %v374
        %376 = vadd.xlane.f32.xlu0 %v375
        %v377 = vpop.xlane.xlu0 %376
        %v378 = vrot.slane %v377, 4
        %v379 = vadd.f32 %v377, %v378
        %v380 = vrot.slane %v379, 2
        %v381 = vadd.f32 %v379, %v380
        %v382 = vrot.slane %v381, 1
        %v383 = vadd.f32 %v381, %v382
        %s384 = vtos %v383
        %v385 = vrcp.pop 1024.0
        %s386 = vtos %v385
        %s387 = smul.f32 %s384, %s386
        %s388 = sadd.f32 %s387, 1e-05
        %v389 = vstv %s388
        %v390 = vrsqrt.pop %v389
        %s391 = vtos %v390
        %v392 = vstv %s391
        %v393 = vmul.f32 %v368, %v392
        %v394 = vld [vmem:[%s1] sm:$0xff]
        %v395 = vmul.f32 %v393, %v394
        %v396 = vld [vmem:[#allocation6] sm:$0xff]
        %v397 = vadd.f32 %v395, %v396
        %v399 = vcombine.high %v397, %v397
        %401 = vrot.lane.b32.xlu0 %v397, 17
        %v402 = vpop.permute.xlu0 %401
        %403 = vrot.lane.b32.xlu0 %v399, 17
        %v404 = vpop.permute.xlu0 %403
        %v405 = vlaneseq
        %v406 = vand.u32 %v405, 127
        %vm407 = vcmp.lt.s32.totalorder %v406, 17
        %v408 = vsel %vm407, %v402, %v404
        %v409 = vsel %vm407, %v404, %v402
        %v410 = vld [vmem:[%s3] sm:$0x3]
        %v412 = vlaneseq
        %v413 = vshrl.u32 %v412, 7
        %v414 = vsub.s32 0, %v413
        %v415 = vrot.slane %v410, %v414
        %v416 = vlaneseq
        %v417 = vshrl.u32 %v416, 7
        %v418 = vsub.s32 1, %v417
        %v419 = vrot.slane %v410, %v418
        %v422 = vmul.f32 %v409, %v415
        %v423 = vmul.f32 %v408, %v419
        %424 = vst [vmem:[#allocation2] sm:$0xf] %v422
        %425 = vst [vmem:[#allocation2 + $0x8] sm:$0xf] %v423
        %426 = vrot.lane.b32.xlu0 %v397, 16
        %v427 = vpop.permute.xlu0 %426
        %428 = vrot.lane.b32.xlu0 %v399, 16
        %v429 = vpop.permute.xlu0 %428
        %vm430 = vcmp.lt.s32.totalorder %v406, 16
        %v431 = vsel %vm430, %v427, %v429
        %v432 = vsel %vm430, %v429, %v427
        %s433 = scalar_lea.vmem %s3, 2
        %v434 = vld [vmem:[%s433] sm:$0x3]
        %v436 = vlaneseq
        %v437 = vshrl.u32 %v436, 7
        %v438 = vsub.s32 0, %v437
        %v439 = vrot.slane %v434, %v438
        %v440 = vlaneseq
        %v441 = vshrl.u32 %v440, 7
        %v442 = vsub.s32 1, %v441
        %v443 = vrot.slane %v434, %v442
        %v446 = vmul.f32 %v432, %v439
        %v447 = vmul.f32 %v431, %v443
        %v450 = vrot.slane %v446, 4
        %v451 = vrot.slane %v447, 4
        %454 = vst [vmem:[#allocation2] sm:$0xf0] %v450
        %455 = vst [vmem:[#allocation2 + $0x8] sm:$0xf0] %v451
        %456 = vrot.lane.b32.xlu0 %v397, 15
        %v457 = vpop.permute.xlu0 %456
        %458 = vrot.lane.b32.xlu0 %v399, 15
        %v459 = vpop.permute.xlu0 %458
        %vm460 = vcmp.lt.s32.totalorder %v406, 15
        %v461 = vsel %vm460, %v457, %v459
        %v462 = vsel %vm460, %v459, %v457
        %s463 = scalar_lea.vmem %s3, 4
        %v464 = vld [vmem:[%s463] sm:$0x3]
        %v466 = vlaneseq
        %v467 = vshrl.u32 %v466, 7
        %v468 = vsub.s32 0, %v467
        %v469 = vrot.slane %v464, %v468
        %v470 = vlaneseq
        %v471 = vshrl.u32 %v470, 7
        %v472 = vsub.s32 1, %v471
        %v473 = vrot.slane %v464, %v472
        %v476 = vmul.f32 %v462, %v469
        %v477 = vmul.f32 %v461, %v473
        %478 = vst [vmem:[#allocation2 + $0x10] sm:$0xf] %v476
        %479 = vst [vmem:[#allocation2 + $0x18] sm:$0xf] %v477
        %480 = vrot.lane.b32.xlu0 %v397, 1
        %v481 = vpop.permute.xlu0 %480
        %482 = vrot.lane.b32.xlu0 %v399, 1
        %v483 = vpop.permute.xlu0 %482
        %vm484 = vcmp.lt.s32.totalorder %v406, 1
        %v485 = vsel %vm484, %v481, %v483
        %v486 = vsel %vm484, %v483, %v481
        %s487 = scalar_lea.vmem %s3, 6
        %v488 = vld [vmem:[%s487] sm:$0x3]
        %v490 = vlaneseq
        %v491 = vshrl.u32 %v490, 7
        %v492 = vsub.s32 0, %v491
        %v493 = vrot.slane %v488, %v492
        %v494 = vlaneseq
        %v495 = vshrl.u32 %v494, 7
        %v496 = vsub.s32 1, %v495
        %v497 = vrot.slane %v488, %v496
        %v500 = vmul.f32 %v486, %v493
        %v501 = vmul.f32 %v485, %v497
        %v504 = vrot.slane %v500, 4
        %v505 = vrot.slane %v501, 4
        %508 = vst [vmem:[#allocation2 + $0x10] sm:$0xf0] %v504
        %509 = vst [vmem:[#allocation2 + $0x18] sm:$0xf0] %v505
        %s510 = scalar_lea.vmem %s3, 8
        %v511 = vld [vmem:[%s510] sm:$0x3]
        %v513 = vlaneseq
        %v514 = vshrl.u32 %v513, 7
        %v515 = vsub.s32 0, %v514
        %v516 = vrot.slane %v511, %v515
        %v517 = vlaneseq
        %v518 = vshrl.u32 %v517, 7
        %v519 = vsub.s32 1, %v518
        %v520 = vrot.slane %v511, %v519
        %v521 = vcombine.low %v516, %v520
        %v523 = vmul.f32 %v397, %v521
        %v525 = vcombine.high %v523, %v523
        %527 = vst [vmem:[#allocation2 + $0x20] sm:$0xf] %v523
        %528 = vst [vmem:[#allocation2 + $0x28] sm:$0xf] %v525
        %529 = vrot.lane.b32.xlu0 %v397, 127
        %v530 = vpop.permute.xlu0 %529
        %531 = vrot.lane.b32.xlu0 %v399, 127
        %v532 = vpop.permute.xlu0 %531
        %vm533 = vcmp.lt.s32.totalorder %v406, 127
        %v534 = vsel %vm533, %v530, %v532
        %v535 = vsel %vm533, %v532, %v530
        %s536 = scalar_lea.vmem %s3, 10
        %v537 = vld [vmem:[%s536] sm:$0x3]
        %v539 = vlaneseq
        %v540 = vshrl.u32 %v539, 7
        %v541 = vsub.s32 0, %v540
        %v542 = vrot.slane %v537, %v541
        %v543 = vlaneseq
        %v544 = vshrl.u32 %v543, 7
        %v545 = vsub.s32 1, %v544
        %v546 = vrot.slane %v537, %v545
        %v549 = vmul.f32 %v534, %v542
        %v550 = vmul.f32 %v535, %v546
        %v553 = vrot.slane %v549, 4
        %v554 = vrot.slane %v550, 4
        %557 = vst [vmem:[#allocation2 + $0x20] sm:$0xf0] %v553
        %558 = vst [vmem:[#allocation2 + $0x28] sm:$0xf0] %v554
        %559 = vrot.lane.b32.xlu0 %v397, 113
        %v560 = vpop.permute.xlu0 %559
        %561 = vrot.lane.b32.xlu0 %v399, 113
        %v562 = vpop.permute.xlu0 %561
        %vm563 = vcmp.lt.s32.totalorder %v406, 113
        %v564 = vsel %vm563, %v560, %v562
        %v565 = vsel %vm563, %v562, %v560
        %s566 = scalar_lea.vmem %s3, 12
        %v567 = vld [vmem:[%s566] sm:$0x3]
        %v569 = vlaneseq
        %v570 = vshrl.u32 %v569, 7
        %v571 = vsub.s32 0, %v570
        %v572 = vrot.slane %v567, %v571
        %v573 = vlaneseq
        %v574 = vshrl.u32 %v573, 7
        %v575 = vsub.s32 1, %v574
        %v576 = vrot.slane %v567, %v575
        %v579 = vmul.f32 %v564, %v572
        %v580 = vmul.f32 %v565, %v576
        %581 = vst [vmem:[#allocation2 + $0x30] sm:$0xf] %v579
        %582 = vst [vmem:[#allocation2 + $0x38] sm:$0xf] %v580
        %583 = vrot.lane.b32.xlu0 %v397, 112
        %v584 = vpop.permute.xlu0 %583
        %585 = vrot.lane.b32.xlu0 %v399, 112
        %v586 = vpop.permute.xlu0 %585
        %vm587 = vcmp.lt.s32.totalorder %v406, 112
        %v588 = vsel %vm587, %v584, %v586
        %v589 = vsel %vm587, %v586, %v584
        %s590 = scalar_lea.vmem %s3, 14
        %v591 = vld [vmem:[%s590] sm:$0x3]
        %v593 = vlaneseq
        %v594 = vshrl.u32 %v593, 7
        %v595 = vsub.s32 0, %v594
        %v596 = vrot.slane %v591, %v595
        %v597 = vlaneseq
        %v598 = vshrl.u32 %v597, 7
        %v599 = vsub.s32 1, %v598
        %v600 = vrot.slane %v591, %v599
        %v603 = vmul.f32 %v588, %v596
        %v604 = vmul.f32 %v589, %v600
        %v607 = vrot.slane %v603, 4
        %v608 = vrot.slane %v604, 4
        %611 = vst [vmem:[#allocation2 + $0x30] sm:$0xf0] %v607
        %612 = vst [vmem:[#allocation2 + $0x38] sm:$0xf0] %v608
        %613 = vrot.lane.b32.xlu0 %v397, 111
        %v614 = vpop.permute.xlu0 %613
        %615 = vrot.lane.b32.xlu0 %v399, 111
        %v616 = vpop.permute.xlu0 %615
        %vm617 = vcmp.lt.s32.totalorder %v406, 111
        %v618 = vsel %vm617, %v614, %v616
        %v619 = vsel %vm617, %v616, %v614
        %s620 = scalar_lea.vmem %s3, 16
        %v621 = vld [vmem:[%s620] sm:$0x3]
        %v623 = vlaneseq
        %v624 = vshrl.u32 %v623, 7
        %v625 = vsub.s32 0, %v624
        %v626 = vrot.slane %v621, %v625
        %v627 = vlaneseq
        %v628 = vshrl.u32 %v627, 7
        %v629 = vsub.s32 1, %v628
        %v630 = vrot.slane %v621, %v629
        %v633 = vmul.f32 %v618, %v626
        %v634 = vmul.f32 %v619, %v630
        %635 = vst [vmem:[#allocation2 + $0x40] sm:$0xf] %v633
        %636 = vst [vmem:[#allocation2 + $0x48] sm:$0xf] %v634
        %v637 = vld [vmem:[#allocation2] sm:$0xff]
        %v638 = vld [vmem:[#allocation2 + $0x8] sm:$0xff]
        %v639 = vld [vmem:[#allocation2 + $0x10] sm:$0xff]
        %v640 = vld [vmem:[#allocation2 + $0x18] sm:$0xff]
        %v641 = vld [vmem:[#allocation2 + $0x20] sm:$0xff]
        %v642 = vld [vmem:[#allocation2 + $0x28] sm:$0xff]
        %v643 = vld [vmem:[#allocation2 + $0x30] sm:$0xff]
        %v644 = vld [vmem:[#allocation2 + $0x38] sm:$0xff]
        %v645 = vld [vmem:[#allocation2 + $0x40] sm:$0xf]
        %v646 = vld [vmem:[#allocation2 + $0x48] sm:$0xf]
        %v647 = vld [vmem:[#allocation8] sm:$0xff]
        %v648 = vld [vmem:[%s5] sm:$0xff]
        %650 = vset.pattern.permute.xlu0 0
        %651 = vperm.xlu0 %650, %v648
        %v652 = vpop.permute.xlu0 %651
        %vm654 = vcmask 293888
        %v656 = vsel %vm654, %v647, 0
        %v659 = vsel %vm351, %v645, 0
        %v662 = vsel %vm351, %v646, 0
        %664 = vmatprep.subr.mxu0 %v638
        %665 = vmatpush1.msra.mxu0 %v637
        %666 = vmatprep.subr.mxu0 %v640
        %667 = vmatpush1.msra.mxu0 %v639
        %668 = vmatprep.subr.mxu0 %v642
        %669 = vmatpush1.msra.mxu0 %v641
        %670 = vmatprep.subr.mxu0 %v644
        %671 = vmatpush1.msra.mxu0 %v643
        %672 = vmatprep.subr.mxu0 %v662
        %673 = vmatpush1.msra.mxu0 %v659
        %674 = vmatprep.subr.mxu0 0.0
        %675 = vmatpush1.msra.mxu0 0.0
        %676 = vmatprep.subr.mxu0 0.0
        %677 = vmatpush1.msra.mxu0 0.0
        %678 = vmatprep.subr.mxu0 0.0
        %679 = vmatpush1.msra.mxu0 0.0
        %680 = vmatprep.subr.mxu0 0.0
        %681 = vmatpush1.msra.mxu0 0.0
        %682 = vmatprep.subr.mxu0 0.0
        %683 = vmatpush1.msra.mxu0 0.0
        %684 = vmatprep.subr.mxu0 0.0
        %685 = vmatpush1.msra.mxu0 0.0
        %686 = vmatprep.subr.mxu0 0.0
        %687 = vmatpush1.msra.mxu0 0.0
        %688 = vmatprep.subr.mxu0 0.0
        %689 = vmatpush1.msra.mxu0 0.0
        %690 = vmatprep.subr.mxu0 0.0
        %691 = vmatpush1.msra.mxu0 0.0
        %692 = vmatprep.subr.mxu0 0.0
        %693 = vmatpush1.msra.mxu0 0.0
        %694 = vmatprep.subr.mxu0 0.0
        %695 = vmatpush1.msra.mxu0 0.0
        %696 = vmatprep.subr.mxu0 0.0
        %697 = vmatpush1.msra.mxu0 0.0
        %698 = vmatprep.subr.mxu0 0.0
        %699 = vmatpush1.msra.mxu0 0.0
        %700 = vmatprep.subr.mxu0 0.0
        %701 = vmatpush1.msra.mxu0 0.0
        %702 = vmatprep.subr.mxu0 0.0
        %703 = vmatpush1.msra.mxu0 0.0
        %704 = vmatprep.subr.mxu0 0.0
        %705 = vmatpush1.msra.mxu0 0.0
        %706 = vmatprep.subr.mxu0 0.0
        %707 = vmatpush1.msra.mxu0 0.0
        %708 = vmatprep.subr.mxu0 0.0
        %709 = vmatpush1.msra.mxu0 0.0
        %710 = vmatprep.subr.mxu0 0.0
        %711 = vmatpush1.msra.mxu0 0.0
        %712 = vmatprep.subr.mxu0 0.0
        %713 = vmatpush1.msra.mxu0 0.0
        %714 = vmatprep.subr.mxu0 0.0
        %715 = vmatpush1.msra.mxu0 0.0
        %716 = vmatprep.subr.mxu0 0.0
        %717 = vmatpush1.msra.mxu0 0.0
        %718 = vmatprep.subr.mxu0 0.0
        %719 = vmatpush1.msra.mxu0 0.0
        %720 = vmatprep.subr.mxu0 0.0
        %721 = vmatpush1.msra.mxu0 0.0
        %722 = vmatprep.subr.mxu0 0.0
        %723 = vmatpush1.msra.mxu0 0.0
        %724 = vmatprep.subr.mxu0 0.0
        %725 = vmatpush1.msra.mxu0 0.0
        %726 = vmatprep.subr.mxu0 0.0
        %727 = vmatpush1.msra.mxu0 0.0
        %728 = vmatprep.mubr.f32.mxu0 0.0
        %729 = vmatmul.mubr.f32.gmra.mrb[0].mxu0 %v656
        %v730 = vpop.f32.mrb[0].mxu0
        %v731 = vadd.f32 %v652, %v730
        %v732 = vpop.f32.mrb[0].mxu0
        %v733 = vadd.f32 %v652, %v732
        %734 = vdwg.mxu0
        %v735 = vxor.u32 %v731, 2147483648
        %v736 = vxor.u32 %v733, 2147483648
        %v737 = vmul.f32 %v735, 1.442695
        %v738 = vpow.pop %v737
        %v739 = vmul.f32 %v736, 1.442695
        %v740 = vpow.pop %v739
        %v741 = vadd.f32 %v738, 1.0
        %v742 = vadd.f32 %v740, 1.0
        %v743 = vrcp.pop %v741
        %v744 = vmul.f32 1.0, %v743
        %v745 = vrcp.pop %v742
        %v746 = vmul.f32 1.0, %v745
        %v747 = vmul.f32 %v731, %v744
        %v748 = vmul.f32 %v733, %v746
        %749 = vrot.lane.b32.xlu0 %v747, 17
        %v750 = vpop.permute.xlu0 %749
        %751 = vrot.lane.b32.xlu0 %v748, 17
        %v752 = vpop.permute.xlu0 %751
        %v753 = vsel %vm407, %v750, %v752
        %v754 = vsel %vm407, %v752, %v750
        %v755 = vld [vmem:[%s3] sm:$0x3]
        %v757 = vlaneseq
        %v758 = vshrl.u32 %v757, 7
        %v759 = vsub.s32 0, %v758
        %v760 = vrot.slane %v755, %v759
        %v761 = vlaneseq
        %v762 = vshrl.u32 %v761, 7
        %v763 = vsub.s32 1, %v762
        %v764 = vrot.slane %v755, %v763
        %v767 = vmul.f32 %v754, %v760
        %v768 = vmul.f32 %v753, %v764
        %769 = vst [vmem:[#allocation2] sm:$0xff] %v767
        %770 = vst [vmem:[#allocation2 + $0x8] sm:$0xff] %v768
        %771 = vrot.lane.b32.xlu0 %v747, 16
        %v772 = vpop.permute.xlu0 %771
        %773 = vrot.lane.b32.xlu0 %v748, 16
        %v774 = vpop.permute.xlu0 %773
        %v775 = vsel %vm430, %v772, %v774
        %v776 = vsel %vm430, %v774, %v772
        %v777 = vld [vmem:[%s433] sm:$0x3]
        %v779 = vlaneseq
        %v780 = vshrl.u32 %v779, 7
        %v781 = vsub.s32 0, %v780
        %v782 = vrot.slane %v777, %v781
        %v783 = vlaneseq
        %v784 = vshrl.u32 %v783, 7
        %v785 = vsub.s32 1, %v784
        %v786 = vrot.slane %v777, %v785
        %v789 = vmul.f32 %v776, %v782
        %v790 = vmul.f32 %v775, %v786
        %791 = vst [vmem:[#allocation2 + $0x10] sm:$0xff] %v789
        %792 = vst [vmem:[#allocation2 + $0x18] sm:$0xff] %v790
        %793 = vrot.lane.b32.xlu0 %v747, 15
        %v794 = vpop.permute.xlu0 %793
        %795 = vrot.lane.b32.xlu0 %v748, 15
        %v796 = vpop.permute.xlu0 %795
        %v797 = vsel %vm460, %v794, %v796
        %v798 = vsel %vm460, %v796, %v794
        %v799 = vld [vmem:[%s463] sm:$0x3]
        %v801 = vlaneseq
        %v802 = vshrl.u32 %v801, 7
        %v803 = vsub.s32 0, %v802
        %v804 = vrot.slane %v799, %v803
        %v805 = vlaneseq
        %v806 = vshrl.u32 %v805, 7
        %v807 = vsub.s32 1, %v806
        %v808 = vrot.slane %v799, %v807
        %v811 = vmul.f32 %v798, %v804
        %v812 = vmul.f32 %v797, %v808
        %813 = vst [vmem:[#allocation2 + $0x20] sm:$0xff] %v811
        %814 = vst [vmem:[#allocation2 + $0x28] sm:$0xff] %v812
        %815 = vrot.lane.b32.xlu0 %v747, 1
        %v816 = vpop.permute.xlu0 %815
        %817 = vrot.lane.b32.xlu0 %v748, 1
        %v818 = vpop.permute.xlu0 %817
        %v819 = vsel %vm484, %v816, %v818
        %v820 = vsel %vm484, %v818, %v816
        %v821 = vld [vmem:[%s487] sm:$0x3]
        %v823 = vlaneseq
        %v824 = vshrl.u32 %v823, 7
        %v825 = vsub.s32 0, %v824
        %v826 = vrot.slane %v821, %v825
        %v827 = vlaneseq
        %v828 = vshrl.u32 %v827, 7
        %v829 = vsub.s32 1, %v828
        %v830 = vrot.slane %v821, %v829
        %v833 = vmul.f32 %v820, %v826
        %v834 = vmul.f32 %v819, %v830
        %835 = vst [vmem:[#allocation2 + $0x30] sm:$0xff] %v833
        %836 = vst [vmem:[#allocation2 + $0x38] sm:$0xff] %v834
        %v837 = vld [vmem:[%s510] sm:$0x3]
        %v839 = vlaneseq
        %v840 = vshrl.u32 %v839, 7
        %v841 = vsub.s32 0, %v840
        %v842 = vrot.slane %v837, %v841
        %v843 = vlaneseq
        %v844 = vshrl.u32 %v843, 7
        %v845 = vsub.s32 1, %v844
        %v846 = vrot.slane %v837, %v845
        %v849 = vmul.f32 %v747, %v842
        %v850 = vmul.f32 %v748, %v846
        %851 = vst [vmem:[#allocation2 + $0x40] sm:$0xff] %v849
        %852 = vst [vmem:[#allocation2 + $0x48] sm:$0xff] %v850
        %853 = vrot.lane.b32.xlu0 %v747, 127
        %v854 = vpop.permute.xlu0 %853
        %855 = vrot.lane.b32.xlu0 %v748, 127
        %v856 = vpop.permute.xlu0 %855
        %v857 = vsel %vm533, %v854, %v856
        %v858 = vsel %vm533, %v856, %v854
        %v859 = vld [vmem:[%s536] sm:$0x3]
        %v861 = vlaneseq
        %v862 = vshrl.u32 %v861, 7
        %v863 = vsub.s32 0, %v862
        %v864 = vrot.slane %v859, %v863
        %v865 = vlaneseq
        %v866 = vshrl.u32 %v865, 7
        %v867 = vsub.s32 1, %v866
        %v868 = vrot.slane %v859, %v867
        %v871 = vmul.f32 %v857, %v864
        %v872 = vmul.f32 %v858, %v868
        %873 = vst [vmem:[#allocation2 + $0x50] sm:$0xff] %v871
        %874 = vst [vmem:[#allocation2 + $0x58] sm:$0xff] %v872
        %875 = vrot.lane.b32.xlu0 %v747, 113
        %v876 = vpop.permute.xlu0 %875
        %877 = vrot.lane.b32.xlu0 %v748, 113
        %v878 = vpop.permute.xlu0 %877
        %v879 = vsel %vm563, %v876, %v878
        %v880 = vsel %vm563, %v878, %v876
        %v881 = vld [vmem:[%s566] sm:$0x3]
        %v883 = vlaneseq
        %v884 = vshrl.u32 %v883, 7
        %v885 = vsub.s32 0, %v884
        %v886 = vrot.slane %v881, %v885
        %v887 = vlaneseq
        %v888 = vshrl.u32 %v887, 7
        %v889 = vsub.s32 1, %v888
        %v890 = vrot.slane %v881, %v889
        %v893 = vmul.f32 %v879, %v886
        %v894 = vmul.f32 %v880, %v890
        %895 = vst [vmem:[#allocation2 + $0x60] sm:$0xff] %v893
        %896 = vst [vmem:[#allocation2 + $0x68] sm:$0xff] %v894
        %897 = vrot.lane.b32.xlu0 %v747, 112
        %v898 = vpop.permute.xlu0 %897
        %899 = vrot.lane.b32.xlu0 %v748, 112
        %v900 = vpop.permute.xlu0 %899
        %v901 = vsel %vm587, %v898, %v900
        %v902 = vsel %vm587, %v900, %v898
        %v903 = vld [vmem:[%s590] sm:$0x3]
        %v905 = vlaneseq
        %v906 = vshrl.u32 %v905, 7
        %v907 = vsub.s32 0, %v906
        %v908 = vrot.slane %v903, %v907
        %v909 = vlaneseq
        %v910 = vshrl.u32 %v909, 7
        %v911 = vsub.s32 1, %v910
        %v912 = vrot.slane %v903, %v911
        %v915 = vmul.f32 %v901, %v908
        %v916 = vmul.f32 %v902, %v912
        %917 = vst [vmem:[#allocation2 + $0x70] sm:$0xff] %v915
        %918 = vst [vmem:[#allocation2 + $0x78] sm:$0xff] %v916
        %919 = vrot.lane.b32.xlu0 %v747, 111
        %v920 = vpop.permute.xlu0 %919
        %921 = vrot.lane.b32.xlu0 %v748, 111
        %v922 = vpop.permute.xlu0 %921
        %v923 = vsel %vm617, %v920, %v922
        %v924 = vsel %vm617, %v922, %v920
        %v925 = vld [vmem:[%s620] sm:$0x3]
        %v927 = vlaneseq
        %v928 = vshrl.u32 %v927, 7
        %v929 = vsub.s32 0, %v928
        %v930 = vrot.slane %v925, %v929
        %v931 = vlaneseq
        %v932 = vshrl.u32 %v931, 7
        %v933 = vsub.s32 1, %v932
        %v934 = vrot.slane %v925, %v933
        %v937 = vmul.f32 %v923, %v930
        %v938 = vmul.f32 %v924, %v934
        %939 = vst [vmem:[#allocation2 + $0x80] sm:$0xff] %v937
        %940 = vst [vmem:[#allocation2 + $0x88] sm:$0xff] %v938
        %v941 = vld [vmem:[#allocation2] sm:$0xff]
        %v942 = vld [vmem:[#allocation2 + $0x8] sm:$0xff]
        %v943 = vld [vmem:[#allocation2 + $0x10] sm:$0xff]
        %v944 = vld [vmem:[#allocation2 + $0x18] sm:$0xff]
        %v945 = vld [vmem:[#allocation2 + $0x20] sm:$0xff]
        %v946 = vld [vmem:[#allocation2 + $0x28] sm:$0xff]
        %v947 = vld [vmem:[#allocation2 + $0x30] sm:$0xff]
        %v948 = vld [vmem:[#allocation2 + $0x38] sm:$0xff]
        %v949 = vld [vmem:[#allocation2 + $0x40] sm:$0xff]
        %v950 = vld [vmem:[#allocation2 + $0x48] sm:$0xff]
        %v951 = vld [vmem:[#allocation2 + $0x50] sm:$0xff]
        %v952 = vld [vmem:[#allocation2 + $0x58] sm:$0xff]
        %v953 = vld [vmem:[#allocation2 + $0x60] sm:$0xff]
        %v954 = vld [vmem:[#allocation2 + $0x68] sm:$0xff]
        %v955 = vld [vmem:[#allocation2 + $0x70] sm:$0xff]
        %v956 = vld [vmem:[#allocation2 + $0x78] sm:$0xff]
        %v957 = vld [vmem:[#allocation2 + $0x80] sm:$0xff]
        %v958 = vld [vmem:[#allocation2 + $0x88] sm:$0xff]
        %v959 = vld [vmem:[%s6] sm:$0xff]
        %v960 = vld [vmem:[%s7] sm:$0xff]
        %962 = vset.pattern.permute.xlu0 0
        %963 = vperm.xlu0 %962, %v960
        %v964 = vpop.permute.xlu0 %963
        %vm966 = vcmask 588800
        %v968 = vsel %vm966, %v959, 0
        %970 = vmatprep.subr.mxu0 %v942
        %971 = vmatpush1.msra.mxu0 %v941
        %972 = vmatprep.subr.mxu0 %v944
        %973 = vmatpush1.msra.mxu0 %v943
        %974 = vmatprep.subr.mxu0 %v946
        %975 = vmatpush1.msra.mxu0 %v945
        %976 = vmatprep.subr.mxu0 %v948
        %977 = vmatpush1.msra.mxu0 %v947
        %978 = vmatprep.subr.mxu0 %v950
        %979 = vmatpush1.msra.mxu0 %v949
        %980 = vmatprep.subr.mxu0 %v952
        %981 = vmatpush1.msra.mxu0 %v951
        %982 = vmatprep.subr.mxu0 %v954
        %983 = vmatpush1.msra.mxu0 %v953
        %984 = vmatprep.subr.mxu0 %v956
        %985 = vmatpush1.msra.mxu0 %v955
        %986 = vmatprep.subr.mxu0 %v958
        %987 = vmatpush1.msra.mxu0 %v957
        %988 = vmatprep.subr.mxu0 0.0
        %989 = vmatpush1.msra.mxu0 0.0
        %990 = vmatprep.subr.mxu0 0.0
        %991 = vmatpush1.msra.mxu0 0.0
        %992 = vmatprep.subr.mxu0 0.0
        %993 = vmatpush1.msra.mxu0 0.0
        %994 = vmatprep.subr.mxu0 0.0
        %995 = vmatpush1.msra.mxu0 0.0
        %996 = vmatprep.subr.mxu0 0.0
        %997 = vmatpush1.msra.mxu0 0.0
        %998 = vmatprep.subr.mxu0 0.0
        %999 = vmatpush1.msra.mxu0 0.0
        %1000 = vmatprep.subr.mxu0 0.0
        %1001 = vmatpush1.msra.mxu0 0.0
        %1002 = vmatprep.subr.mxu0 0.0
        %1003 = vmatpush1.msra.mxu0 0.0
        %1004 = vmatprep.subr.mxu0 0.0
        %1005 = vmatpush1.msra.mxu0 0.0
        %1006 = vmatprep.subr.mxu0 0.0
        %1007 = vmatpush1.msra.mxu0 0.0
        %1008 = vmatprep.subr.mxu0 0.0
        %1009 = vmatpush1.msra.mxu0 0.0
        %1010 = vmatprep.subr.mxu0 0.0
        %1011 = vmatpush1.msra.mxu0 0.0
        %1012 = vmatprep.subr.mxu0 0.0
        %1013 = vmatpush1.msra.mxu0 0.0
        %1014 = vmatprep.subr.mxu0 0.0
        %1015 = vmatpush1.msra.mxu0 0.0
        %1016 = vmatprep.subr.mxu0 0.0
        %1017 = vmatpush1.msra.mxu0 0.0
        %1018 = vmatprep.subr.mxu0 0.0
        %1019 = vmatpush1.msra.mxu0 0.0
        %1020 = vmatprep.subr.mxu0 0.0
        %1021 = vmatpush1.msra.mxu0 0.0
        %1022 = vmatprep.subr.mxu0 0.0
        %1023 = vmatpush1.msra.mxu0 0.0
        %1024 = vmatprep.subr.mxu0 0.0
        %1025 = vmatpush1.msra.mxu0 0.0
        %1026 = vmatprep.subr.mxu0 0.0
        %1027 = vmatpush1.msra.mxu0 0.0
        %1028 = vmatprep.subr.mxu0 0.0
        %1029 = vmatpush1.msra.mxu0 0.0
        %1030 = vmatprep.subr.mxu0 0.0
        %1031 = vmatpush1.msra.mxu0 0.0
        %1032 = vmatprep.subr.mxu0 0.0
        %1033 = vmatpush1.msra.mxu0 0.0
        %1034 = vmatprep.mubr.f32.mxu0 0.0
        %1035 = vmatmul.mubr.f32.gmra.mrb[0].mxu0 %v968
        %v1036 = vpop.f32.mrb[0].mxu0
        %v1037 = vadd.f32 %v964, %v1036
        %v1038 = vpop.f32.mrb[0].mxu0
        %v1039 = vadd.f32 %v964, %v1038
        %1040 = vdwg.mxu0
        %v1041 = vxor.u32 %v1037, 2147483648
        %v1042 = vxor.u32 %v1039, 2147483648
        %v1043 = vmul.f32 %v1041, 1.442695
        %v1044 = vpow.pop %v1043
        %v1045 = vmul.f32 %v1042, 1.442695
        %v1046 = vpow.pop %v1045
        %v1047 = vadd.f32 %v1044, 1.0
        %v1048 = vadd.f32 %v1046, 1.0
        %v1049 = vrcp.pop %v1047
        %v1050 = vmul.f32 1.0, %v1049
        %v1051 = vrcp.pop %v1048
        %v1052 = vmul.f32 1.0, %v1051
        %v1053 = vmul.f32 %v1037, %v1050
        %v1054 = vmul.f32 %v1039, %v1052
        %1055 = vst [vmem:[%s346] sm:$0xff] %v1053
        %1056 = vst [vmem:[%s346 + $0x8] sm:$0xff] %v1054
        %s1057 = sand.u32 %s207, 1
        %s1058 = scalar_lea.sflag [#allocation5], %s1057
        %s1059 = sand.u32 %s207, 1
        %s1060 = smul.addr %s1059, 16
        %s1061 = scalar_lea.vmem [#allocation9], %s1060
        // Predicated region
        $region65: #{tpu_custom_call.1} parent=51 // pred_check
          %p1062 = pneg %p217
        $region66: #{tpu_custom_call.1} parent=51 // pred_check_branch
          %1064 = sbr.rel (%p1062) target = $region68
        $region67: #{tpu_custom_call.1} parent=51 // pred_region
          %s1066 = ssub.s32 256, 256
          %1067 = vsyncadd %s1058, %s1066
          %s1068 = smul.addr %s26, 2
          %s1069 = smul.addr %s1068, 128
          %s1070 = scalar_lea.hbm %s8, %s1069
          %s1072 = sshll.u32 %s1061, 4
          %s1073 = int_to_ptr.vmem [resolvable:$true] %s1072
          %1075 = dma.vmem_to_hbm [thread:$0]  %s1073, 256, %s1070, %s1058
        $region68: #{tpu_custom_call.1} parent=51 // pred_fallthru
          _
      $region52: #{tpu_custom_call.1} parent=5 // pred_fallthru
        _
      %p1076 = scmp.le.s32.totalorder 2, %s21
      // Predicated region
      $region69: #{tpu_custom_call.1} parent=5 // pred_check
        %p1077 = pneg %p1076
      $region70: #{tpu_custom_call.1} parent=5 // pred_check_branch
        %1079 = sbr.rel (%p1077) target = $region72
      $region71: #{tpu_custom_call.1} parent=5 // pred_region
        %s1080 = ssub.s32 %s21, 2
        // Predicated region
        $region73: #{tpu_custom_call.1} parent=71 // pred_check
          %p1081 = pneg %p223
        $region74: #{tpu_custom_call.1} parent=71 // pred_check_branch
          %1083 = sbr.rel (%p1081) target = $region76
        $region75: #{tpu_custom_call.1} parent=71 // pred_region
          %s1084 = sand.u32 %s208, 1
          %s1085 = scalar_lea.sflag [#allocation5], %s1084
          %s1086 = sand.u32 %s208, 1
          %s1087 = smul.addr %s1086, 16
          %s1088 = scalar_lea.vmem [#allocation9], %s1087
          %1089 = dma.done %s1085, 256
        $region76: #{tpu_custom_call.1} parent=71 // pred_fallthru
          _
      $region72: #{tpu_custom_call.1} parent=5 // pred_fallthru
        _
    $region6: #{tpu_custom_call.1} parent=1 // loop_footer
      %s25 = sadd.s32 1, %s21
    $region7: #{tpu_custom_call.1} parent=1 // loop_footer_branch
      %20 = sbr.rel target = $region3
    $region8: #{tpu_custom_call.1} parent=1 // loop_exit
      _
    %1090 = vsyncpa [#allocation4], 1
    %s1091 = scalar_lea.sflag [#allocation4], 1
    %1092 = vsyncpa %s1091, 1
    %1093 = vsyncpa [#allocation7], 1
    %1094 = vsyncpa [#allocation5], 1
    %s1095 = scalar_lea.sflag [#allocation5], 1
    %1096 = vsyncpa %s1095, 1

</llo_original>
